<compile_context>
chip_gen: v7x
topology: tpu7x:2x2x1
jax: 0.10.0
libtpu: 0.0.40
codegen_flags: <defaults>
</compile_context>

<pallas_src>
import jax
import jax.numpy as jnp
from jax.experimental import pallas as pl
from jax.experimental.pallas import tpu as pltpu


def _round_up(n, m):
    return ((n + m - 1) // m) * m


def angle_gnn_forward(x, edge_index, edge_attr, angle_index, angles, params, *, tile=128):
    """Pads everything to lane-dense shapes and runs one tiled pallas_call."""
    assert tile % 128 == 0
    N, Cin = x.shape
    E = edge_index.shape[1]
    A = angle_index.shape[1]
    H = params["ew1"].shape[1]
    Cout = params["aw2"].shape[1]

    f32, bf16 = jnp.float32, jnp.bfloat16
    NP = _round_up(N, 128)               # node axis (lane dim of gather one-hot)
    CoutP = _round_up(Cout, 128)          # lane-dense output channels
    KRP = _round_up(Cin * H, 128)         # Khatri-Rao width (exactly 128 for Cin=4, H=32)
    HPa = _round_up(H, 128)               # angle-branch hidden width
    CinP = _round_up(Cin, 8)
    n_et = pl.cdiv(E, tile)               # edge tiles
    n_at = pl.cdiv(A, tile)               # angle tiles
    EP, AP = n_et * tile, n_at * tile

    # ---- node features in Khatri-Rao layout: x_kr[n, c*H + h] = x[n, c] ----
    x_kr = jnp.repeat(x.astype(f32), H, axis=1)                              # (N, Cin*H)
    x_kr = jnp.pad(x_kr, ((0, NP - N), (0, KRP - Cin * H))).astype(bf16)     # (NP, KRP)

    row = edge_index[0].astype(jnp.int32)
    col = edge_index[1].astype(jnp.int32)
    j = angle_index[1].astype(jnp.int32)

    # ---- combined [edge tiles | angle tiles] stream; -1 = padding (matches no node) ----
    attr_all = jnp.zeros((EP + AP, 1), f32)
    attr_all = attr_all.at[:E, :].set(edge_attr.astype(f32))
    attr_all = attr_all.at[EP:EP + A, :].set(angles.astype(f32))
    gidx_all = jnp.full((EP + AP, 1), -1, jnp.int32).at[:E, 0].set(col)
    sidx_all = (jnp.full((1, EP + AP), -1, jnp.int32)
                .at[0, :E].set(row).at[0, EP:EP + A].set(j))

    # ---- edge_mlp params in Khatri-Rao layout (zero-padded) ----
    ew1_t = jnp.pad(jnp.tile(params["ew1"], (1, Cin)), ((0, 0), (0, KRP - Cin * H)))
    eb1_t = jnp.pad(jnp.tile(params["eb1"], (1, Cin)), ((0, 0), (0, KRP - Cin * H)))
    ew2_kr = params["ew2"].reshape(H, Cin, Cout).transpose(1, 0, 2).reshape(Cin * H, Cout)
    ew2_kr = jnp.pad(ew2_kr, ((0, KRP - Cin * H), (0, CoutP - Cout))).astype(bf16)
    eb2_m = jnp.pad(params["eb2"].reshape(Cin, Cout),
                    ((0, CinP - Cin), (0, CoutP - Cout)))

    # ---- angle_mlp params (zero-padded) ----
    aw1_p = jnp.pad(params["aw1"], ((0, 0), (0, HPa - H)))
    ab1_p = jnp.pad(params["ab1"], ((0, 0), (0, HPa - H)))
    aw2_p = jnp.pad(params["aw2"], ((0, HPa - H), (0, CoutP - Cout))).astype(bf16)
    ab2_p = jnp.pad(params["ab2"], ((0, 0), (0, CoutP - Cout)))

    def kernel(attr_ref, gidx_ref, sidx_ref, x_ref,
               ew1_ref, eb1_ref, ew2_ref, eb2_ref,
               aw1_ref, ab1_ref, aw2_ref, ab2_ref, out_ref):
        t = pl.program_id(0)
        np_, coutp = out_ref.shape
        te = attr_ref.shape[0]

        @pl.when(t == 0)
        def _init():
            out_ref[...] = jnp.zeros((np_, coutp), jnp.float32)

        # Scatter one-hot (both branches): compare + cast, exact in bf16.
        iota_nt = jax.lax.broadcasted_iota(jnp.int32, (np_, te), 0)
        onehot_sc = (iota_nt == sidx_ref[...]).astype(jnp.bfloat16)          # (NP, TE)

        @pl.when(t < n_et)
        def _edge_tile():
            # Linear(1, H) + ReLU as a VPU outer product in the KR-tiled layout:
            # eh[e, c*H + h] = relu(attr[e]*w1[h] + b1[h])
            eh = jnp.maximum(attr_ref[...] * ew1_ref[...] + eb1_ref[...], 0.0)   # (TE, KRP)
            # Gather x[col] (KR layout) via exact bf16 one-hot MXU matmul.
            iota_tn = jax.lax.broadcasted_iota(jnp.int32, (te, np_), 1)
            onehot_g = (iota_tn == gidx_ref[...]).astype(jnp.bfloat16)           # (TE, NP)
            xg = jnp.dot(onehot_g, x_ref[...],
                         preferred_element_type=jnp.float32)                     # (TE, KRP)
            # Khatri-Rao product + ONE dense K = Cin*H MXU matmul.
            g = (xg * eh).astype(jnp.bfloat16)
            msg = jnp.dot(g, ew2_ref[...],
                          preferred_element_type=jnp.float32)                    # (TE, CoutP)
            # Second-layer bias: msg += sum_c x[col, c] * eb2[c, :]
            # (xg[:, c*H] already holds x[col, c]; Cin cheap lane-broadcast FMAs).
            for c in range(Cin):
                msg = msg + xg[:, c * H:c * H + 1] * eb2_ref[c:c + 1, :]
            # Scatter-add at `row` directly into the resident accumulator.
            out_ref[...] += jnp.dot(onehot_sc, msg.astype(jnp.bfloat16),
                                    preferred_element_type=jnp.float32)

        @pl.when(t >= n_et)
        def _angle_tile():
            ah = jnp.maximum(attr_ref[...] * aw1_ref[...] + ab1_ref[...], 0.0)   # (TE, HPa)
            af = jnp.dot(ah.astype(jnp.bfloat16), aw2_ref[...],
                         preferred_element_type=jnp.float32) + ab2_ref[...]      # (TE, CoutP)
            # Scatter-add at `j` into the same resident accumulator.
            out_ref[...] += jnp.dot(onehot_sc, af.astype(jnp.bfloat16),
                                    preferred_element_type=jnp.float32)

    stream_rows = lambda t: (t, 0)     # per-tile (TE, 1) blocks of the combined stream
    stream_cols = lambda t: (0, t)     # per-tile (1, TE) blocks (scatter indices)
    resident = lambda t: (0, 0)        # DMA'd once, stays resident in VMEM

    grid_spec = pltpu.PrefetchScalarGridSpec(
        num_scalar_prefetch=0,
        grid=(n_et + n_at,),
        in_specs=[
            pl.BlockSpec((tile, 1), stream_rows),      # attr (edge_attr | angles)
            pl.BlockSpec((tile, 1), stream_rows),      # gather index (col)
            pl.BlockSpec((1, tile), stream_cols),      # scatter index (row | j)
            pl.BlockSpec((NP, KRP), resident),         # x_kr (bf16)
            pl.BlockSpec((1, KRP), resident),          # ew1 (KR-tiled)
            pl.BlockSpec((1, KRP), resident),          # eb1 (KR-tiled)
            pl.BlockSpec((KRP, CoutP), resident),      # ew2 (KR layout, bf16)
            pl.BlockSpec((CinP, CoutP), resident),     # eb2 (Cin, Cout)
            pl.BlockSpec((1, HPa), resident),          # aw1
            pl.BlockSpec((1, HPa), resident),          # ab1
            pl.BlockSpec((HPa, CoutP), resident),      # aw2 (bf16)
            pl.BlockSpec((1, CoutP), resident),        # ab2
        ],
        out_specs=pl.BlockSpec((NP, CoutP), resident),
    )

    out_pad = pl.pallas_call(
        kernel,
        out_shape=jax.ShapeDtypeStruct((NP, CoutP), jnp.float32),
        grid_spec=grid_spec,
        compiler_params=pltpu.CompilerParams(
            dimension_semantics=("arbitrary",),         # resident-accumulator axis
            vmem_limit_bytes=32 * 1024 * 1024,
        ),
    )(attr_all, gidx_all, sidx_all, x_kr, ew1_t, eb1_t, ew2_kr, eb2_m,
      aw1_p, ab1_p, aw2_p, ab2_p)
    return out_pad[:N, :Cout]


def reference_forward(x, edge_index, edge_attr, angle_index, angles, params):
    """Pure-JAX (f32) reference mirroring the PyTorch module."""
    N, Cin = x.shape
    Cout = params["aw2"].shape[1]
    row, col = edge_index[0], edge_index[1]
    eh = jnp.maximum(edge_attr @ params["ew1"] + params["eb1"], 0.0)
    ew = (eh @ params["ew2"] + params["eb2"]).reshape(-1, Cin, Cout)
    msg = jnp.einsum("ec,eco->eo", x[col], ew)
    agg = jnp.zeros((N, Cout), jnp.float32).at[row].add(msg)
    ah = jnp.maximum(angles @ params["aw1"] + params["ab1"], 0.0)
    af = ah @ params["aw2"] + params["ab2"]
    agg = agg + jnp.zeros((N, Cout), jnp.float32).at[angle_index[1]].add(af)
    return agg


if __name__ == "__main__":
    key = jax.random.PRNGKey(0)
    N, Cin, Cout, E, A, H = 16, 4, 8, 32, 24, 32

    ks = jax.random.split(key, 16)
    # Deterministic synthetic parameters (weights stored as (in, out)).
    params = {
        "ew1": jax.random.normal(ks[0], (1, H), jnp.float32) * 0.5,
        "eb1": jax.random.normal(ks[1], (1, H), jnp.float32) * 0.1,
        "ew2": jax.random.normal(ks[2], (H, Cin * Cout), jnp.float32) * 0.2,
        "eb2": jax.random.normal(ks[3], (1, Cin * Cout), jnp.float32) * 0.1,
        "aw1": jax.random.normal(ks[4], (1, H), jnp.float32) * 0.5,
        "ab1": jax.random.normal(ks[5], (1, H), jnp.float32) * 0.1,
        "aw2": jax.random.normal(ks[6], (H, Cout), jnp.float32) * 0.2,
        "ab2": jax.random.normal(ks[7], (1, Cout), jnp.float32) * 0.1,
    }

    x = jax.random.normal(ks[8], (N, Cin), jnp.float32)
    edge_index = jax.random.randint(ks[9], (2, E), 0, N, jnp.int32)
    edge_attr = jax.random.uniform(ks[10], (E, 1), jnp.float32)
    angle_index = jax.random.randint(ks[11], (3, A), 0, N, jnp.int32)
    angles = jax.random.uniform(ks[12], (A, 1), jnp.float32) * 3.14159

    out = angle_gnn_forward(x, edge_index, edge_attr, angle_index, angles, params)
    out = jax.block_until_ready(out)

    ref = reference_forward(x, edge_index, edge_attr, angle_index, angles, params)
    assert out.shape == (N, Cout)
    # bf16 MXU operands (x, G, W2, msg) bound the relative error at ~1e-2;
    # tolerance is set accordingly (reference stays in f32).
    assert jnp.allclose(out, ref, atol=5e-2, rtol=5e-2), "mismatch vs reference"

    print("KERNEL_OK")
</pallas_src>

<mosaic_0001>
module attributes {stable_mosaic.version = 11 : i64} {
  func.func @kernel(%arg0: i32, %arg1: memref<128x1xf32, #tpu.memory_space<vmem>>, %arg2: memref<128x1xi32, #tpu.memory_space<vmem>>, %arg3: memref<1x128xi32, #tpu.memory_space<vmem>>, %arg4: memref<128x128xbf16, #tpu.memory_space<vmem>>, %arg5: memref<1x128xf32, #tpu.memory_space<vmem>>, %arg6: memref<1x128xf32, #tpu.memory_space<vmem>>, %arg7: memref<128x128xbf16, #tpu.memory_space<vmem>>, %arg8: memref<8x128xf32, #tpu.memory_space<vmem>>, %arg9: memref<1x128xf32, #tpu.memory_space<vmem>>, %arg10: memref<1x128xf32, #tpu.memory_space<vmem>>, %arg11: memref<128x128xbf16, #tpu.memory_space<vmem>>, %arg12: memref<1x128xf32, #tpu.memory_space<vmem>>, %arg13: memref<128x128xf32, #tpu.memory_space<vmem>>) attributes {dimension_semantics = [#tpu.dimension_semantics<arbitrary>], iteration_bounds = array<i64: 2>, scalar_prefetch = 0 : i64, scratch_operands = 0 : i64, tpu.core_type = #tpu.core_type<tc>, window_params = [{transform_indices = @transform_0, window_bounds = array<i64: 128, 1>}, {transform_indices = @transform_1, window_bounds = array<i64: 128, 1>}, {transform_indices = @transform_2, window_bounds = array<i64: 1, 128>}, {pipeline_mode = #tpu.pipeline_mode<synchronous>, transform_indices = @transform_3, window_bounds = array<i64: 128, 128>}, {pipeline_mode = #tpu.pipeline_mode<synchronous>, transform_indices = @transform_4, window_bounds = array<i64: 1, 128>}, {pipeline_mode = #tpu.pipeline_mode<synchronous>, transform_indices = @transform_5, window_bounds = array<i64: 1, 128>}, {pipeline_mode = #tpu.pipeline_mode<synchronous>, transform_indices = @transform_6, window_bounds = array<i64: 128, 128>}, {pipeline_mode = #tpu.pipeline_mode<synchronous>, transform_indices = @transform_7, window_bounds = array<i64: 8, 128>}, {pipeline_mode = #tpu.pipeline_mode<synchronous>, transform_indices = @transform_8, window_bounds = array<i64: 1, 128>}, {pipeline_mode = #tpu.pipeline_mode<synchronous>, transform_indices = @transform_9, window_bounds = array<i64: 1, 128>}, {pipeline_mode = #tpu.pipeline_mode<synchronous>, transform_indices = @transform_10, window_bounds = array<i64: 128, 128>}, {pipeline_mode = #tpu.pipeline_mode<synchronous>, transform_indices = @transform_11, window_bounds = array<i64: 1, 128>}, {pipeline_mode = #tpu.pipeline_mode<synchronous>, transform_indices = @transform_12, window_bounds = array<i64: 128, 128>}]} {
    %c0_i32 = arith.constant 0 : i32
    %0 = arith.cmpi eq, %arg0, %c0_i32 : i32
    %1 = arith.extui %0 : i1 to i32
    %c0_i32_0 = arith.constant 0 : i32
    %2 = arith.cmpi ne, %1, %c0_i32_0 : i32
    scf.if %2 {
      %cst = arith.constant 0.000000e+00 : f32
      %16 = vector.broadcast %cst : f32 to vector<128x128xf32>
      %c0_5 = arith.constant 0 : index
      %c0_6 = arith.constant 0 : index
      %17 = vector.load %arg13[%c0_5, %c0_6] : memref<128x128xf32, #tpu.memory_space<vmem>>, vector<128x128xf32>
      tpu.vector_store %arg13[%c0_5, %c0_6], %16 {strides = array<i32>} : memref<128x128xf32, #tpu.memory_space<vmem>>, vector<128x128xf32>,
    } else {
    }
    %3 = tpu.iota {dimensions = array<i32: 0>} : vector<128x128xi32>
    %c0 = arith.constant 0 : index
    %c0_1 = arith.constant 0 : index
    %4 = vector.load %arg3[%c0, %c0_1] : memref<1x128xi32, #tpu.memory_space<vmem>>, vector<1x128xi32>
    %5 = vector.broadcast %4 : vector<1x128xi32> to vector<128x128xi32>
    %6 = arith.cmpi eq, %3, %5 : vector<128x128xi32>
    %7 = arith.extui %6 : vector<128x128xi1> to vector<128x128xi32>
    %8 = arith.sitofp %7 : vector<128x128xi32> to vector<128x128xf32>
    %9 = arith.truncf %8 : vector<128x128xf32> to vector<128x128xbf16>
    %c1_i32 = arith.constant 1 : i32
    %10 = arith.cmpi slt, %arg0, %c1_i32 : i32
    %11 = arith.extui %10 : i1 to i32
    %c0_i32_2 = arith.constant 0 : i32
    %12 = arith.cmpi ne, %11, %c0_i32_2 : i32
    scf.if %12 {
      %c0_5 = arith.constant 0 : index
      %c0_6 = arith.constant 0 : index
      %16 = vector.load %arg1[%c0_5, %c0_6] : memref<128x1xf32, #tpu.memory_space<vmem>>, vector<128x1xf32>
      %c0_7 = arith.constant 0 : index
      %c0_8 = arith.constant 0 : index
      %17 = vector.load %arg5[%c0_7, %c0_8] : memref<1x128xf32, #tpu.memory_space<vmem>>, vector<1x128xf32>
      %18 = vector.broadcast %16 : vector<128x1xf32> to vector<128x128xf32>
      %19 = vector.broadcast %17 : vector<1x128xf32> to vector<128x128xf32>
      %20 = arith.mulf %18, %19 : vector<128x128xf32>
      %c0_9 = arith.constant 0 : index
      %c0_10 = arith.constant 0 : index
      %21 = vector.load %arg6[%c0_9, %c0_10] : memref<1x128xf32, #tpu.memory_space<vmem>>, vector<1x128xf32>
      %22 = vector.broadcast %21 : vector<1x128xf32> to vector<128x128xf32>
      %23 = arith.addf %20, %22 : vector<128x128xf32>
      %cst = arith.constant 0.000000e+00 : f32
      %24 = vector.broadcast %cst : f32 to vector<128x128xf32>
      %25 = arith.maximumf %23, %24 : vector<128x128xf32>
      %26 = tpu.iota {dimensions = array<i32: 1>} : vector<128x128xi32>
      %c0_11 = arith.constant 0 : index
      %c0_12 = arith.constant 0 : index
      %27 = vector.load %arg2[%c0_11, %c0_12] : memref<128x1xi32, #tpu.memory_space<vmem>>, vector<128x1xi32>
      %28 = vector.broadcast %27 : vector<128x1xi32> to vector<128x128xi32>
      %29 = arith.cmpi eq, %26, %28 : vector<128x128xi32>
      %30 = arith.extui %29 : vector<128x128xi1> to vector<128x128xi32>
      %31 = arith.sitofp %30 : vector<128x128xi32> to vector<128x128xf32>
      %32 = arith.truncf %31 : vector<128x128xf32> to vector<128x128xbf16>
      %c0_13 = arith.constant 0 : index
      %c0_14 = arith.constant 0 : index
      %33 = vector.load %arg4[%c0_13, %c0_14] : memref<128x128xbf16, #tpu.memory_space<vmem>>, vector<128x128xbf16>
      %cst_15 = arith.constant dense<0.000000e+00> : vector<128x128xf32>
      %34 = tpu.matmul %32, %33, %cst_15 {dimension_numbers = #tpu.dot_dimension_numbers<[1], [0], [0], [1], [0, 0, 1, 1], [], []>} : vector<128x128xbf16>, vector<128x128xbf16>, vector<128x128xf32> -> vector<128x128xf32>
      %35 = arith.mulf %34, %25 : vector<128x128xf32>
      %36 = arith.truncf %35 : vector<128x128xf32> to vector<128x128xbf16>
      %c0_16 = arith.constant 0 : index
      %c0_17 = arith.constant 0 : index
      %37 = vector.load %arg7[%c0_16, %c0_17] : memref<128x128xbf16, #tpu.memory_space<vmem>>, vector<128x128xbf16>
      %cst_18 = arith.constant dense<0.000000e+00> : vector<128x128xf32>
      %38 = tpu.matmul %36, %37, %cst_18 {dimension_numbers = #tpu.dot_dimension_numbers<[1], [0], [0], [1], [0, 0, 1, 1], [], []>} : vector<128x128xbf16>, vector<128x128xbf16>, vector<128x128xf32> -> vector<128x128xf32>
      %39 = vector.extract_strided_slice %34 {offsets = [0, 0], sizes = [128, 1], strides = [1, 1]} : vector<128x128xf32> to vector<128x1xf32>
      %c0_19 = arith.constant 0 : index
      %c0_20 = arith.constant 0 : index
      %40 = vector.load %arg8[%c0_19, %c0_20] : memref<8x128xf32, #tpu.memory_space<vmem>>, vector<1x128xf32>
      %41 = vector.broadcast %39 : vector<128x1xf32> to vector<128x128xf32>
      %42 = vector.broadcast %40 : vector<1x128xf32> to vector<128x128xf32>
      %43 = arith.mulf %41, %42 : vector<128x128xf32>
      %44 = arith.addf %38, %43 : vector<128x128xf32>
      %45 = vector.extract_strided_slice %34 {offsets = [0, 32], sizes = [128, 1], strides = [1, 1]} : vector<128x128xf32> to vector<128x1xf32>
      %c1 = arith.constant 1 : index
      %c0_21 = arith.constant 0 : index
      %46 = vector.load %arg8[%c1, %c0_21] : memref<8x128xf32, #tpu.memory_space<vmem>>, vector<1x128xf32>
      %47 = vector.broadcast %45 : vector<128x1xf32> to vector<128x128xf32>
      %48 = vector.broadcast %46 : vector<1x128xf32> to vector<128x128xf32>
      %49 = arith.mulf %47, %48 : vector<128x128xf32>
      %50 = arith.addf %44, %49 : vector<128x128xf32>
      %51 = vector.extract_strided_slice %34 {offsets = [0, 64], sizes = [128, 1], strides = [1, 1]} : vector<128x128xf32> to vector<128x1xf32>
      %c2 = arith.constant 2 : index
      %c0_22 = arith.constant 0 : index
      %52 = vector.load %arg8[%c2, %c0_22] : memref<8x128xf32, #tpu.memory_space<vmem>>, vector<1x128xf32>
      %53 = vector.broadcast %51 : vector<128x1xf32> to vector<128x128xf32>
      %54 = vector.broadcast %52 : vector<1x128xf32> to vector<128x128xf32>
      %55 = arith.mulf %53, %54 : vector<128x128xf32>
      %56 = arith.addf %50, %55 : vector<128x128xf32>
      %57 = vector.extract_strided_slice %34 {offsets = [0, 96], sizes = [128, 1], strides = [1, 1]} : vector<128x128xf32> to vector<128x1xf32>
      %c3 = arith.constant 3 : index
      %c0_23 = arith.constant 0 : index
      %58 = vector.load %arg8[%c3, %c0_23] : memref<8x128xf32, #tpu.memory_space<vmem>>, vector<1x128xf32>
      %59 = vector.broadcast %57 : vector<128x1xf32> to vector<128x128xf32>
      %60 = vector.broadcast %58 : vector<1x128xf32> to vector<128x128xf32>
      %61 = arith.mulf %59, %60 : vector<128x128xf32>
      %62 = arith.addf %56, %61 : vector<128x128xf32>
      %c0_24 = arith.constant 0 : index
      %c0_25 = arith.constant 0 : index
      %63 = vector.load %arg13[%c0_24, %c0_25] : memref<128x128xf32, #tpu.memory_space<vmem>>, vector<128x128xf32>
      %64 = arith.truncf %62 : vector<128x128xf32> to vector<128x128xbf16>
      %cst_26 = arith.constant dense<0.000000e+00> : vector<128x128xf32>
      %65 = tpu.matmul %9, %64, %cst_26 {dimension_numbers = #tpu.dot_dimension_numbers<[1], [0], [0], [1], [0, 0, 1, 1], [], []>} : vector<128x128xbf16>, vector<128x128xbf16>, vector<128x128xf32> -> vector<128x128xf32>
      %66 = arith.addf %63, %65 : vector<128x128xf32>
      %c0_27 = arith.constant 0 : index
      %c0_28 = arith.constant 0 : index
      %67 = vector.load %arg13[%c0_27, %c0_28] : memref<128x128xf32, #tpu.memory_space<vmem>>, vector<128x128xf32>
      tpu.vector_store %arg13[%c0_27, %c0_28], %66 {strides = array<i32>} : memref<128x128xf32, #tpu.memory_space<vmem>>, vector<128x128xf32>,
    } else {
    }
    %c1_i32_3 = arith.constant 1 : i32
    %13 = arith.cmpi sge, %arg0, %c1_i32_3 : i32
    %14 = arith.extui %13 : i1 to i32
    %c0_i32_4 = arith.constant 0 : i32
    %15 = arith.cmpi ne, %14, %c0_i32_4 : i32
    scf.if %15 {
      %c0_5 = arith.constant 0 : index
      %c0_6 = arith.constant 0 : index
      %16 = vector.load %arg1[%c0_5, %c0_6] : memref<128x1xf32, #tpu.memory_space<vmem>>, vector<128x1xf32>
      %c0_7 = arith.constant 0 : index
      %c0_8 = arith.constant 0 : index
      %17 = vector.load %arg9[%c0_7, %c0_8] : memref<1x128xf32, #tpu.memory_space<vmem>>, vector<1x128xf32>
      %18 = vector.broadcast %16 : vector<128x1xf32> to vector<128x128xf32>
      %19 = vector.broadcast %17 : vector<1x128xf32> to vector<128x128xf32>
      %20 = arith.mulf %18, %19 : vector<128x128xf32>
      %c0_9 = arith.constant 0 : index
      %c0_10 = arith.constant 0 : index
      %21 = vector.load %arg10[%c0_9, %c0_10] : memref<1x128xf32, #tpu.memory_space<vmem>>, vector<1x128xf32>
      %22 = vector.broadcast %21 : vector<1x128xf32> to vector<128x128xf32>
      %23 = arith.addf %20, %22 : vector<128x128xf32>
      %cst = arith.constant 0.000000e+00 : f32
      %24 = vector.broadcast %cst : f32 to vector<128x128xf32>
      %25 = arith.maximumf %23, %24 : vector<128x128xf32>
      %26 = arith.truncf %25 : vector<128x128xf32> to vector<128x128xbf16>
      %c0_11 = arith.constant 0 : index
      %c0_12 = arith.constant 0 : index
      %27 = vector.load %arg11[%c0_11, %c0_12] : memref<128x128xbf16, #tpu.memory_space<vmem>>, vector<128x128xbf16>
      %cst_13 = arith.constant dense<0.000000e+00> : vector<128x128xf32>
      %28 = tpu.matmul %26, %27, %cst_13 {dimension_numbers = #tpu.dot_dimension_numbers<[1], [0], [0], [1], [0, 0, 1, 1], [], []>} : vector<128x128xbf16>, vector<128x128xbf16>, vector<128x128xf32> -> vector<128x128xf32>
      %c0_14 = arith.constant 0 : index
      %c0_15 = arith.constant 0 : index
      %29 = vector.load %arg12[%c0_14, %c0_15] : memref<1x128xf32, #tpu.memory_space<vmem>>, vector<1x128xf32>
      %30 = vector.broadcast %29 : vector<1x128xf32> to vector<128x128xf32>
      %31 = arith.addf %28, %30 : vector<128x128xf32>
      %c0_16 = arith.constant 0 : index
      %c0_17 = arith.constant 0 : index
      %32 = vector.load %arg13[%c0_16, %c0_17] : memref<128x128xf32, #tpu.memory_space<vmem>>, vector<128x128xf32>
      %33 = arith.truncf %31 : vector<128x128xf32> to vector<128x128xbf16>
      %cst_18 = arith.constant dense<0.000000e+00> : vector<128x128xf32>
      %34 = tpu.matmul %9, %33, %cst_18 {dimension_numbers = #tpu.dot_dimension_numbers<[1], [0], [0], [1], [0, 0, 1, 1], [], []>} : vector<128x128xbf16>, vector<128x128xbf16>, vector<128x128xf32> -> vector<128x128xf32>
      %35 = arith.addf %32, %34 : vector<128x128xf32>
      %c0_19 = arith.constant 0 : index
      %c0_20 = arith.constant 0 : index
      %36 = vector.load %arg13[%c0_19, %c0_20] : memref<128x128xf32, #tpu.memory_space<vmem>>, vector<128x128xf32>
      tpu.vector_store %arg13[%c0_19, %c0_20], %35 {strides = array<i32>} : memref<128x128xf32, #tpu.memory_space<vmem>>, vector<128x128xf32>,
    } else {
    }
    return
  }
  func.func @transform_0(%arg0: i32) -> (i32, i32) {
    %c0_i32 = arith.constant 0 : i32
    %c0_i32_0 = arith.constant 0 : i32
    return %arg0, %c0_i32 : i32, i32
  }
  func.func @transform_1(%arg0: i32) -> (i32, i32) {
    %c0_i32 = arith.constant 0 : i32
    %c0_i32_0 = arith.constant 0 : i32
    return %arg0, %c0_i32 : i32, i32
  }
  func.func @transform_2(%arg0: i32) -> (i32, i32) {
    %c0_i32 = arith.constant 0 : i32
    %c0_i32_0 = arith.constant 0 : i32
    return %c0_i32, %arg0 : i32, i32
  }
  func.func @transform_3(%arg0: i32) -> (i32, i32) {
    %c0_i32 = arith.constant 0 : i32
    %c0_i32_0 = arith.constant 0 : i32
    %c0_i32_1 = arith.constant 0 : i32
    return %c0_i32, %c0_i32_0 : i32, i32
  }
  func.func @transform_4(%arg0: i32) -> (i32, i32) {
    %c0_i32 = arith.constant 0 : i32
    %c0_i32_0 = arith.constant 0 : i32
    %c0_i32_1 = arith.constant 0 : i32
    return %c0_i32, %c0_i32_0 : i32, i32
  }
  func.func @transform_5(%arg0: i32) -> (i32, i32) {
    %c0_i32 = arith.constant 0 : i32
    %c0_i32_0 = arith.constant 0 : i32
    %c0_i32_1 = arith.constant 0 : i32
    return %c0_i32, %c0_i32_0 : i32, i32
  }
  func.func @transform_6(%arg0: i32) -> (i32, i32) {
    %c0_i32 = arith.constant 0 : i32
    %c0_i32_0 = arith.constant 0 : i32
    %c0_i32_1 = arith.constant 0 : i32
    return %c0_i32, %c0_i32_0 : i32, i32
  }
  func.func @transform_7(%arg0: i32) -> (i32, i32) {
    %c0_i32 = arith.constant 0 : i32
    %c0_i32_0 = arith.constant 0 : i32
    %c0_i32_1 = arith.constant 0 : i32
    return %c0_i32, %c0_i32_0 : i32, i32
  }
  func.func @transform_8(%arg0: i32) -> (i32, i32) {
    %c0_i32 = arith.constant 0 : i32
    %c0_i32_0 = arith.constant 0 : i32
    %c0_i32_1 = arith.constant 0 : i32
    return %c0_i32, %c0_i32_0 : i32, i32
  }
  func.func @transform_9(%arg0: i32) -> (i32, i32) {
    %c0_i32 = arith.constant 0 : i32
    %c0_i32_0 = arith.constant 0 : i32
    %c0_i32_1 = arith.constant 0 : i32
    return %c0_i32, %c0_i32_0 : i32, i32
  }
  func.func @transform_10(%arg0: i32) -> (i32, i32) {
    %c0_i32 = arith.constant 0 : i32
    %c0_i32_0 = arith.constant 0 : i32
    %c0_i32_1 = arith.constant 0 : i32
    return %c0_i32, %c0_i32_0 : i32, i32
  }
  func.func @transform_11(%arg0: i32) -> (i32, i32) {
    %c0_i32 = arith.constant 0 : i32
    %c0_i32_0 = arith.constant 0 : i32
    %c0_i32_1 = arith.constant 0 : i32
    return %c0_i32, %c0_i32_0 : i32, i32
  }
  func.func @transform_12(%arg0: i32) -> (i32, i32) {
    %c0_i32 = arith.constant 0 : i32
    %c0_i32_0 = arith.constant 0 : i32
    %c0_i32_1 = arith.constant 0 : i32
    return %c0_i32, %c0_i32_0 : i32, i32
  }
}

</mosaic_0001>

<llo_original>
// kernel: tpu_custom_call.1
$region0: #{tpu_custom_call.1}
  #allocation0 [shape = 'u32[]', space=smem, size = 0x4, offset = 0x4, fixed_abs, tag = 'smem constant byte address 0x4 - core index']
  #allocation1 [shape = 'u32[144,128]{1,0:T(1,128)}', space=vmem, size = 0x12000, scoped, tag = 'internal scratch']
  %s0 = inlined_call_operand.vmem [shape: f32[256,1], index: 0, kind: input, shape index: {}]
  %s1 = inlined_call_operand.vmem [shape: s32[256,1], index: 1, kind: input, shape index: {}]
  %s2 = inlined_call_operand.vmem [shape: s32[1,256], index: 2, kind: input, shape index: {}]
  %s3 = inlined_call_operand.vmem [shape: bf16[128,128], index: 3, kind: input, shape index: {}]
  %s4 = inlined_call_operand.vmem [shape: f32[1,128], index: 4, kind: input, shape index: {}]
  %s5 = inlined_call_operand.vmem [shape: f32[1,128], index: 5, kind: input, shape index: {}]
  %s6 = inlined_call_operand.vmem [shape: bf16[128,128], index: 6, kind: input, shape index: {}]
  %s7 = inlined_call_operand.vmem [shape: f32[8,128], index: 7, kind: input, shape index: {}]
  %s8 = inlined_call_operand.vmem [shape: f32[1,128], index: 8, kind: input, shape index: {}]
  %s9 = inlined_call_operand.vmem [shape: f32[1,128], index: 9, kind: input, shape index: {}]
  %s10 = inlined_call_operand.vmem [shape: bf16[128,128], index: 10, kind: input, shape index: {}]
  %s11 = inlined_call_operand.vmem [shape: f32[1,128], index: 11, kind: input, shape index: {}]
  %s12 = inlined_call_operand.hbm [shape: f32[128,128], index: 12, kind: output, shape index: {}]
  %s13 = sld [smem:[#allocation0]]
  $region93: #{tpu_custom_call.1} parent=0
    _
  %s15 = ssub.s32 1, %s13
  %s16 = scalar_select 0, %s15, %s13
  $region1: #{tpu_custom_call.1} parent=0
    #allocation2 [shape = 'u8[65536]{0}', space=vmem, size = 0x10000, scoped, tag = 'output window, operand 0, single buffered']
    #allocation3 [shape = 's32[2]{0}', space=sflag, size = 0x8, scoped, tag = 'scoped memory for tpu_custom_call.1']
    %17 = vsyncpa [#allocation3], 0
    loop: start=0, step=1, limit=4
    $region2: #{tpu_custom_call.1} parent=1 // loop_pre_header
      _
    $region3: #{tpu_custom_call.1} parent=1 // loop_header
      %s19 = sphi 0, %s23
      %p20 = scmp.ge.s32.totalorder %s19, 4
      %s29 = sphi 0, %s31
      %s32 = sphi 0, %s29
      %s33 = sphi 0, %s32
      %s49 = sphi 0, %s33
      %s55 = sphi 0, %s57
      %s58 = sphi 0, %s55
      %s59 = sphi 0, %s58
      %s75 = sphi 0, %s59
      %s81 = sphi 0, %s83
      %s84 = sphi 0, %s81
      %s85 = sphi 0, %s84
      %s101 = sphi 0, %s85
      %s105 = sphi 0, %s105
      %s107 = sphi 0, %s105
      %s108 = sphi 0, %s107
      %s122 = sphi 0, %s108
      %s126 = sphi 0, %s126
      %s128 = sphi 0, %s126
      %s129 = sphi 0, %s128
      %s143 = sphi 0, %s129
      %s147 = sphi 0, %s147
      %s149 = sphi 0, %s147
      %s150 = sphi 0, %s149
      %s164 = sphi 0, %s150
      %s168 = sphi 0, %s168
      %s170 = sphi 0, %s168
      %s171 = sphi 0, %s170
      %s185 = sphi 0, %s171
      %s189 = sphi 0, %s189
      %s191 = sphi 0, %s189
      %s192 = sphi 0, %s191
      %s206 = sphi 0, %s192
      %s210 = sphi 0, %s210
      %s212 = sphi 0, %s210
      %s213 = sphi 0, %s212
      %s227 = sphi 0, %s213
      %s231 = sphi 0, %s231
      %s233 = sphi 0, %s231
      %s234 = sphi 0, %s233
      %s248 = sphi 0, %s234
      %s252 = sphi 0, %s252
      %s254 = sphi 0, %s252
      %s255 = sphi 0, %s254
      %s269 = sphi 0, %s255
      %s273 = sphi 0, %s273
      %s275 = sphi 0, %s273
      %s276 = sphi 0, %s275
      %s290 = sphi 0, %s276
      %s294 = sphi 0, %s294
      %s296 = sphi 0, %s294
      %s297 = sphi 0, %s296
      %s311 = sphi 0, %s297
    $region4: #{tpu_custom_call.1} parent=1 // loop_header_branch
      %22 = sbr.rel (%p20) target = $region8
    $region5: #{tpu_custom_call.1} parent=1 // loop_body
      %s24 = ssub.s32 %s19, 1
      %s25 = ssub.s32 %s19, 2
      %s26 = sadd.s32 %s19, 1
      %s27 = ssub.s32 %s19, %s26
      %p28 = scmp.eq.s32.totalorder %s27, 0
      %s30 = sadd.s32 %s29, 1
      %s31 = scalar_select %p28, %s29, %s30
      %p34 = pneg %p28
      %p35 = scmp.eq.s32.totalorder %s19, 1
      %p36 = por %p34, %p35
      %p37 = scmp.ne.s32.totalorder %s29, %s32
      %p38 = scmp.eq.s32.totalorder %s19, 0
      %p39 = por %p37, %p38
      %p40 = scmp.ne.s32.totalorder %s29, %s32
      %p41 = scmp.eq.s32.totalorder %s24, 1
      %p42 = por %p40, %p41
      %p43 = scmp.ne.s32.totalorder %s32, %s33
      %p44 = scmp.eq.s32.totalorder %s24, 0
      %p45 = por %p43, %p44
      %p46 = scmp.ne.s32.totalorder %s32, %s33
      %p47 = scmp.eq.s32.totalorder %s25, 1
      %p48 = por %p46, %p47
      %p50 = scmp.ne.s32.totalorder %s33, %s49
      %p51 = scmp.eq.s32.totalorder %s25, 0
      %p52 = por %p50, %p51
      %s53 = ssub.s32 %s19, %s26
      %p54 = scmp.eq.s32.totalorder %s53, 0
      %s56 = sadd.s32 %s55, 1
      %s57 = scalar_select %p54, %s55, %s56
      %p60 = pneg %p54
      %p61 = scmp.eq.s32.totalorder %s19, 1
      %p62 = por %p60, %p61
      %p63 = scmp.ne.s32.totalorder %s55, %s58
      %p64 = scmp.eq.s32.totalorder %s19, 0
      %p65 = por %p63, %p64
      %p66 = scmp.ne.s32.totalorder %s55, %s58
      %p67 = scmp.eq.s32.totalorder %s24, 1
      %p68 = por %p66, %p67
      %p69 = scmp.ne.s32.totalorder %s58, %s59
      %p70 = scmp.eq.s32.totalorder %s24, 0
      %p71 = por %p69, %p70
      %p72 = scmp.ne.s32.totalorder %s58, %s59
      %p73 = scmp.eq.s32.totalorder %s25, 1
      %p74 = por %p72, %p73
      %p76 = scmp.ne.s32.totalorder %s59, %s75
      %p77 = scmp.eq.s32.totalorder %s25, 0
      %p78 = por %p76, %p77
      %s79 = ssub.s32 %s19, %s26
      %p80 = scmp.eq.s32.totalorder %s79, 0
      %s82 = sadd.s32 %s81, 1
      %s83 = scalar_select %p80, %s81, %s82
      %p86 = pneg %p80
      %p87 = scmp.eq.s32.totalorder %s19, 1
      %p88 = por %p86, %p87
      %p89 = scmp.ne.s32.totalorder %s81, %s84
      %p90 = scmp.eq.s32.totalorder %s19, 0
      %p91 = por %p89, %p90
      %p92 = scmp.ne.s32.totalorder %s81, %s84
      %p93 = scmp.eq.s32.totalorder %s24, 1
      %p94 = por %p92, %p93
      %p95 = scmp.ne.s32.totalorder %s84, %s85
      %p96 = scmp.eq.s32.totalorder %s24, 0
      %p97 = por %p95, %p96
      %p98 = scmp.ne.s32.totalorder %s84, %s85
      %p99 = scmp.eq.s32.totalorder %s25, 1
      %p100 = por %p98, %p99
      %p102 = scmp.ne.s32.totalorder %s85, %s101
      %p103 = scmp.eq.s32.totalorder %s25, 0
      %p104 = por %p102, %p103
      %s106 = sadd.s32 %s105, 1
      %p109 = scmp.eq.s32.totalorder %s19, 1
      %p110 = scmp.ne.s32.totalorder %s105, %s107
      %p111 = scmp.eq.s32.totalorder %s19, 0
      %p112 = por %p110, %p111
      %p113 = scmp.ne.s32.totalorder %s105, %s107
      %p114 = scmp.eq.s32.totalorder %s24, 1
      %p115 = por %p113, %p114
      %p116 = scmp.ne.s32.totalorder %s107, %s108
      %p117 = scmp.eq.s32.totalorder %s24, 0
      %p118 = por %p116, %p117
      %p119 = scmp.ne.s32.totalorder %s107, %s108
      %p120 = scmp.eq.s32.totalorder %s25, 1
      %p121 = por %p119, %p120
      %p123 = scmp.ne.s32.totalorder %s108, %s122
      %p124 = scmp.eq.s32.totalorder %s25, 0
      %p125 = por %p123, %p124
      %s127 = sadd.s32 %s126, 1
      %p130 = scmp.eq.s32.totalorder %s19, 1
      %p131 = scmp.ne.s32.totalorder %s126, %s128
      %p132 = scmp.eq.s32.totalorder %s19, 0
      %p133 = por %p131, %p132
      %p134 = scmp.ne.s32.totalorder %s126, %s128
      %p135 = scmp.eq.s32.totalorder %s24, 1
      %p136 = por %p134, %p135
      %p137 = scmp.ne.s32.totalorder %s128, %s129
      %p138 = scmp.eq.s32.totalorder %s24, 0
      %p139 = por %p137, %p138
      %p140 = scmp.ne.s32.totalorder %s128, %s129
      %p141 = scmp.eq.s32.totalorder %s25, 1
      %p142 = por %p140, %p141
      %p144 = scmp.ne.s32.totalorder %s129, %s143
      %p145 = scmp.eq.s32.totalorder %s25, 0
      %p146 = por %p144, %p145
      %s148 = sadd.s32 %s147, 1
      %p151 = scmp.eq.s32.totalorder %s19, 1
      %p152 = scmp.ne.s32.totalorder %s147, %s149
      %p153 = scmp.eq.s32.totalorder %s19, 0
      %p154 = por %p152, %p153
      %p155 = scmp.ne.s32.totalorder %s147, %s149
      %p156 = scmp.eq.s32.totalorder %s24, 1
      %p157 = por %p155, %p156
      %p158 = scmp.ne.s32.totalorder %s149, %s150
      %p159 = scmp.eq.s32.totalorder %s24, 0
      %p160 = por %p158, %p159
      %p161 = scmp.ne.s32.totalorder %s149, %s150
      %p162 = scmp.eq.s32.totalorder %s25, 1
      %p163 = por %p161, %p162
      %p165 = scmp.ne.s32.totalorder %s150, %s164
      %p166 = scmp.eq.s32.totalorder %s25, 0
      %p167 = por %p165, %p166
      %s169 = sadd.s32 %s168, 1
      %p172 = scmp.eq.s32.totalorder %s19, 1
      %p173 = scmp.ne.s32.totalorder %s168, %s170
      %p174 = scmp.eq.s32.totalorder %s19, 0
      %p175 = por %p173, %p174
      %p176 = scmp.ne.s32.totalorder %s168, %s170
      %p177 = scmp.eq.s32.totalorder %s24, 1
      %p178 = por %p176, %p177
      %p179 = scmp.ne.s32.totalorder %s170, %s171
      %p180 = scmp.eq.s32.totalorder %s24, 0
      %p181 = por %p179, %p180
      %p182 = scmp.ne.s32.totalorder %s170, %s171
      %p183 = scmp.eq.s32.totalorder %s25, 1
      %p184 = por %p182, %p183
      %p186 = scmp.ne.s32.totalorder %s171, %s185
      %p187 = scmp.eq.s32.totalorder %s25, 0
      %p188 = por %p186, %p187
      %s190 = sadd.s32 %s189, 1
      %p193 = scmp.eq.s32.totalorder %s19, 1
      %p194 = scmp.ne.s32.totalorder %s189, %s191
      %p195 = scmp.eq.s32.totalorder %s19, 0
      %p196 = por %p194, %p195
      %p197 = scmp.ne.s32.totalorder %s189, %s191
      %p198 = scmp.eq.s32.totalorder %s24, 1
      %p199 = por %p197, %p198
      %p200 = scmp.ne.s32.totalorder %s191, %s192
      %p201 = scmp.eq.s32.totalorder %s24, 0
      %p202 = por %p200, %p201
      %p203 = scmp.ne.s32.totalorder %s191, %s192
      %p204 = scmp.eq.s32.totalorder %s25, 1
      %p205 = por %p203, %p204
      %p207 = scmp.ne.s32.totalorder %s192, %s206
      %p208 = scmp.eq.s32.totalorder %s25, 0
      %p209 = por %p207, %p208
      %s211 = sadd.s32 %s210, 1
      %p214 = scmp.eq.s32.totalorder %s19, 1
      %p215 = scmp.ne.s32.totalorder %s210, %s212
      %p216 = scmp.eq.s32.totalorder %s19, 0
      %p217 = por %p215, %p216
      %p218 = scmp.ne.s32.totalorder %s210, %s212
      %p219 = scmp.eq.s32.totalorder %s24, 1
      %p220 = por %p218, %p219
      %p221 = scmp.ne.s32.totalorder %s212, %s213
      %p222 = scmp.eq.s32.totalorder %s24, 0
      %p223 = por %p221, %p222
      %p224 = scmp.ne.s32.totalorder %s212, %s213
      %p225 = scmp.eq.s32.totalorder %s25, 1
      %p226 = por %p224, %p225
      %p228 = scmp.ne.s32.totalorder %s213, %s227
      %p229 = scmp.eq.s32.totalorder %s25, 0
      %p230 = por %p228, %p229
      %s232 = sadd.s32 %s231, 1
      %p235 = scmp.eq.s32.totalorder %s19, 1
      %p236 = scmp.ne.s32.totalorder %s231, %s233
      %p237 = scmp.eq.s32.totalorder %s19, 0
      %p238 = por %p236, %p237
      %p239 = scmp.ne.s32.totalorder %s231, %s233
      %p240 = scmp.eq.s32.totalorder %s24, 1
      %p241 = por %p239, %p240
      %p242 = scmp.ne.s32.totalorder %s233, %s234
      %p243 = scmp.eq.s32.totalorder %s24, 0
      %p244 = por %p242, %p243
      %p245 = scmp.ne.s32.totalorder %s233, %s234
      %p246 = scmp.eq.s32.totalorder %s25, 1
      %p247 = por %p245, %p246
      %p249 = scmp.ne.s32.totalorder %s234, %s248
      %p250 = scmp.eq.s32.totalorder %s25, 0
      %p251 = por %p249, %p250
      %s253 = sadd.s32 %s252, 1
      %p256 = scmp.eq.s32.totalorder %s19, 1
      %p257 = scmp.ne.s32.totalorder %s252, %s254
      %p258 = scmp.eq.s32.totalorder %s19, 0
      %p259 = por %p257, %p258
      %p260 = scmp.ne.s32.totalorder %s252, %s254
      %p261 = scmp.eq.s32.totalorder %s24, 1
      %p262 = por %p260, %p261
      %p263 = scmp.ne.s32.totalorder %s254, %s255
      %p264 = scmp.eq.s32.totalorder %s24, 0
      %p265 = por %p263, %p264
      %p266 = scmp.ne.s32.totalorder %s254, %s255
      %p267 = scmp.eq.s32.totalorder %s25, 1
      %p268 = por %p266, %p267
      %p270 = scmp.ne.s32.totalorder %s255, %s269
      %p271 = scmp.eq.s32.totalorder %s25, 0
      %p272 = por %p270, %p271
      %s274 = sadd.s32 %s273, 1
      %p277 = scmp.eq.s32.totalorder %s19, 1
      %p278 = scmp.ne.s32.totalorder %s273, %s275
      %p279 = scmp.eq.s32.totalorder %s19, 0
      %p280 = por %p278, %p279
      %p281 = scmp.ne.s32.totalorder %s273, %s275
      %p282 = scmp.eq.s32.totalorder %s24, 1
      %p283 = por %p281, %p282
      %p284 = scmp.ne.s32.totalorder %s275, %s276
      %p285 = scmp.eq.s32.totalorder %s24, 0
      %p286 = por %p284, %p285
      %p287 = scmp.ne.s32.totalorder %s275, %s276
      %p288 = scmp.eq.s32.totalorder %s25, 1
      %p289 = por %p287, %p288
      %p291 = scmp.ne.s32.totalorder %s276, %s290
      %p292 = scmp.eq.s32.totalorder %s25, 0
      %p293 = por %p291, %p292
      %s295 = sadd.s32 %s294, 1
      %p298 = scmp.eq.s32.totalorder %s19, 1
      %p299 = scmp.ne.s32.totalorder %s294, %s296
      %p300 = scmp.eq.s32.totalorder %s19, 0
      %p301 = por %p299, %p300
      %p302 = scmp.ne.s32.totalorder %s294, %s296
      %p303 = scmp.eq.s32.totalorder %s24, 1
      %p304 = por %p302, %p303
      %p305 = scmp.ne.s32.totalorder %s296, %s297
      %p306 = scmp.eq.s32.totalorder %s24, 0
      %p307 = por %p305, %p306
      %p308 = scmp.ne.s32.totalorder %s296, %s297
      %p309 = scmp.eq.s32.totalorder %s25, 1
      %p310 = por %p308, %p309
      %p312 = scmp.ne.s32.totalorder %s297, %s311
      %p313 = scmp.eq.s32.totalorder %s25, 0
      %p314 = por %p312, %p313
      %p315 = scmp.le.s32.totalorder 1, %s19
      %p316 = scmp.lt.s32.totalorder %s19, 3
      %p317 = pnand %p315, %p316
      %p318 = pneg %p317
      // Predicated region
      $region9: #{tpu_custom_call.1} parent=5 // pred_check
        _
      $region10: #{tpu_custom_call.1} parent=5 // pred_check_branch
        %320 = sbr.rel (%p317) target = $region12
      $region11: #{tpu_custom_call.1} parent=5 // pred_region
        %s321 = ssub.s32 %s19, 1
        // Predicated region
        $region13: #{tpu_custom_call.1} parent=11 // pred_check
          %p322 = pneg %p118
        $region14: #{tpu_custom_call.1} parent=11 // pred_check_branch
          %324 = sbr.rel (%p322) target = $region16
        $region15: #{tpu_custom_call.1} parent=11 // pred_region
          _
        $region16: #{tpu_custom_call.1} parent=11 // pred_fallthru
          _
        // Predicated region
        $region17: #{tpu_custom_call.1} parent=11 // pred_check
          %p325 = pneg %p139
        $region18: #{tpu_custom_call.1} parent=11 // pred_check_branch
          %327 = sbr.rel (%p325) target = $region20
        $region19: #{tpu_custom_call.1} parent=11 // pred_region
          _
        $region20: #{tpu_custom_call.1} parent=11 // pred_fallthru
          _
        // Predicated region
        $region21: #{tpu_custom_call.1} parent=11 // pred_check
          %p328 = pneg %p160
        $region22: #{tpu_custom_call.1} parent=11 // pred_check_branch
          %330 = sbr.rel (%p328) target = $region24
        $region23: #{tpu_custom_call.1} parent=11 // pred_region
          _
        $region24: #{tpu_custom_call.1} parent=11 // pred_fallthru
          _
        // Predicated region
        $region25: #{tpu_custom_call.1} parent=11 // pred_check
          %p331 = pneg %p181
        $region26: #{tpu_custom_call.1} parent=11 // pred_check_branch
          %333 = sbr.rel (%p331) target = $region28
        $region27: #{tpu_custom_call.1} parent=11 // pred_region
          _
        $region28: #{tpu_custom_call.1} parent=11 // pred_fallthru
          _
        // Predicated region
        $region29: #{tpu_custom_call.1} parent=11 // pred_check
          %p334 = pneg %p202
        $region30: #{tpu_custom_call.1} parent=11 // pred_check_branch
          %336 = sbr.rel (%p334) target = $region32
        $region31: #{tpu_custom_call.1} parent=11 // pred_region
          _
        $region32: #{tpu_custom_call.1} parent=11 // pred_fallthru
          _
        // Predicated region
        $region33: #{tpu_custom_call.1} parent=11 // pred_check
          %p337 = pneg %p223
        $region34: #{tpu_custom_call.1} parent=11 // pred_check_branch
          %339 = sbr.rel (%p337) target = $region36
        $region35: #{tpu_custom_call.1} parent=11 // pred_region
          _
        $region36: #{tpu_custom_call.1} parent=11 // pred_fallthru
          _
        // Predicated region
        $region37: #{tpu_custom_call.1} parent=11 // pred_check
          %p340 = pneg %p244
        $region38: #{tpu_custom_call.1} parent=11 // pred_check_branch
          %342 = sbr.rel (%p340) target = $region40
        $region39: #{tpu_custom_call.1} parent=11 // pred_region
          _
        $region40: #{tpu_custom_call.1} parent=11 // pred_fallthru
          _
        // Predicated region
        $region41: #{tpu_custom_call.1} parent=11 // pred_check
          %p343 = pneg %p265
        $region42: #{tpu_custom_call.1} parent=11 // pred_check_branch
          %345 = sbr.rel (%p343) target = $region44
        $region43: #{tpu_custom_call.1} parent=11 // pred_region
          _
        $region44: #{tpu_custom_call.1} parent=11 // pred_fallthru
          _
        // Predicated region
        $region45: #{tpu_custom_call.1} parent=11 // pred_check
          %p346 = pneg %p286
        $region46: #{tpu_custom_call.1} parent=11 // pred_check_branch
          %348 = sbr.rel (%p346) target = $region48
        $region47: #{tpu_custom_call.1} parent=11 // pred_region
          _
        $region48: #{tpu_custom_call.1} parent=11 // pred_fallthru
          _
      $region12: #{tpu_custom_call.1} parent=5 // pred_fallthru
        _
      %p349 = scmp.lt.s32.totalorder %s19, 2
      // Predicated region
      $region49: #{tpu_custom_call.1} parent=5 // pred_check
        %p350 = pneg %p349
      $region50: #{tpu_custom_call.1} parent=5 // pred_check_branch
        %352 = sbr.rel (%p350) target = $region52
      $region51: #{tpu_custom_call.1} parent=5 // pred_region
        // Predicated region
        $region53: #{tpu_custom_call.1} parent=51 // pred_check
          %p353 = pneg %p39
        $region54: #{tpu_custom_call.1} parent=51 // pred_check_branch
          %355 = sbr.rel (%p353) target = $region56
        $region55: #{tpu_custom_call.1} parent=51 // pred_region
          %s356 = smul.u32 16, %s19
          %p357 = scmp.lt.s32.totalorder %s356, 31
          %s358 = scalar_select %p357, %s356, 31
          %s359 = smul.addr %s358, 8
          %s360 = scalar_lea.vmem %s0, %s359
          %s361 = smul.u32 16, %s19
        $region56: #{tpu_custom_call.1} parent=51 // pred_fallthru
          _
        // Predicated region
        $region57: #{tpu_custom_call.1} parent=51 // pred_check
          %p362 = pneg %p65
        $region58: #{tpu_custom_call.1} parent=51 // pred_check_branch
          %364 = sbr.rel (%p362) target = $region60
        $region59: #{tpu_custom_call.1} parent=51 // pred_region
          %s365 = smul.u32 16, %s19
          %p366 = scmp.lt.s32.totalorder %s365, 31
          %s367 = scalar_select %p366, %s365, 31
          %s368 = smul.addr %s367, 8
          %s369 = scalar_lea.vmem %s1, %s368
          %s370 = smul.u32 16, %s19
        $region60: #{tpu_custom_call.1} parent=51 // pred_fallthru
          _
        // Predicated region
        $region61: #{tpu_custom_call.1} parent=51 // pred_check
          %p371 = pneg %p91
        $region62: #{tpu_custom_call.1} parent=51 // pred_check_branch
          %373 = sbr.rel (%p371) target = $region64
        $region63: #{tpu_custom_call.1} parent=51 // pred_region
          %p374 = scmp.lt.s32.totalorder %s19, 1
          %s375 = scalar_select %p374, %s19, 1
          %s376 = scalar_lea.vmem %s2, %s375
        $region64: #{tpu_custom_call.1} parent=51 // pred_fallthru
          _
      $region52: #{tpu_custom_call.1} parent=5 // pred_fallthru
        _
      %p377 = scmp.le.s32.totalorder 1, %s19
      %p378 = scmp.lt.s32.totalorder %s19, 3
      %p379 = pnand %p377, %p378
      %p380 = pneg %p379
      // Predicated region
      $region65: #{tpu_custom_call.1} parent=5 // pred_check
        _
      $region66: #{tpu_custom_call.1} parent=5 // pred_check_branch
        %382 = sbr.rel (%p379) target = $region68
      $region67: #{tpu_custom_call.1} parent=5 // pred_region
        %s383 = ssub.s32 %s19, 1
        %s384 = smul.u32 16, %s24
        %p385 = scmp.lt.s32.totalorder %s384, 31
        %s386 = scalar_select %p385, %s384, 31
        %s387 = smul.addr %s386, 8
        %s388 = scalar_lea.vmem %s0, %s387
        %p389 = pneg %p45
        %p390 = pneg %p42
        %s391 = smul.u32 16, %s24
        %p392 = scmp.lt.s32.totalorder %s391, 31
        %s393 = scalar_select %p392, %s391, 31
        %s394 = smul.addr %s393, 8
        %s395 = scalar_lea.vmem %s1, %s394
        %p396 = pneg %p71
        %p397 = pneg %p68
        %p398 = scmp.lt.s32.totalorder %s24, 1
        %s399 = scalar_select %p398, %s24, 1
        %s400 = scalar_lea.vmem %s2, %s399
        %p401 = pneg %p97
        %p402 = pneg %p94
        %p403 = pneg %p118
        %p404 = pneg %p115
        %p405 = pneg %p139
        %p406 = pneg %p136
        %p407 = pneg %p160
        %p408 = pneg %p157
        %p409 = pneg %p181
        %p410 = pneg %p178
        %p411 = pneg %p202
        %p412 = pneg %p199
        %p413 = pneg %p223
        %p414 = pneg %p220
        %p415 = pneg %p244
        %p416 = pneg %p241
        %p417 = pneg %p265
        %p418 = pneg %p262
        %p419 = pneg %p286
        %p420 = pneg %p283
        %p421 = pneg %p307
        %p422 = pneg %p304
        %s423 = smul.u32 16, %s24
        %p424 = scmp.lt.s32.totalorder %s423, 31
        %s425 = scalar_select %p424, %s423, 31
        %s426 = smul.addr %s425, 8
        %s427 = scalar_lea.vmem %s0, %s426
        %s428 = smul.u32 16, %s24
        %s429 = smul.u32 16, %s24
        %p430 = scmp.lt.s32.totalorder %s429, 31
        %s431 = scalar_select %p430, %s429, 31
        %s432 = smul.addr %s431, 8
        %s433 = scalar_lea.vmem %s1, %s432
        %s434 = smul.u32 16, %s24
        %p435 = scmp.lt.s32.totalorder %s24, 1
        %s436 = scalar_select %p435, %s24, 1
        %s437 = scalar_lea.vmem %s2, %s436
        %p439 = scmp.eq.s32.totalorder %s24, 0
        // Predicated region
        $region69: #{tpu_custom_call.1} parent=67 // pred_check
          %p440 = pneg %p439
        $region70: #{tpu_custom_call.1} parent=67 // pred_check_branch
          %442 = sbr.rel (%p440) target = $region72
        $region71: #{tpu_custom_call.1} parent=67 // pred_region
          %443 = vst [vmem:[#allocation2] sm:$0xff] 0.0
          %444 = vst [vmem:[#allocation2 + $0x8] sm:$0xff] 0.0
          %445 = vst [vmem:[#allocation2 + $0x10] sm:$0xff] 0.0
          %446 = vst [vmem:[#allocation2 + $0x18] sm:$0xff] 0.0
          %447 = vst [vmem:[#allocation2 + $0x20] sm:$0xff] 0.0
          %448 = vst [vmem:[#allocation2 + $0x28] sm:$0xff] 0.0
          %449 = vst [vmem:[#allocation2 + $0x30] sm:$0xff] 0.0
          %450 = vst [vmem:[#allocation2 + $0x38] sm:$0xff] 0.0
          %451 = vst [vmem:[#allocation2 + $0x40] sm:$0xff] 0.0
          %452 = vst [vmem:[#allocation2 + $0x48] sm:$0xff] 0.0
          %453 = vst [vmem:[#allocation2 + $0x50] sm:$0xff] 0.0
          %454 = vst [vmem:[#allocation2 + $0x58] sm:$0xff] 0.0
          %455 = vst [vmem:[#allocation2 + $0x60] sm:$0xff] 0.0
          %456 = vst [vmem:[#allocation2 + $0x68] sm:$0xff] 0.0
          %457 = vst [vmem:[#allocation2 + $0x70] sm:$0xff] 0.0
          %458 = vst [vmem:[#allocation2 + $0x78] sm:$0xff] 0.0
        $region72: #{tpu_custom_call.1} parent=67 // pred_fallthru
          _
        %v459 = vlaneseq
        %v460 = vshrl.u32 %v459, 7
        %v461 = vadd.s32 %v460, 8
        %v462 = vadd.s32 %v460, 16
        %v463 = vadd.s32 %v460, 24
        %v464 = vadd.s32 %v460, 32
        %v465 = vadd.s32 %v460, 40
        %v466 = vadd.s32 %v460, 48
        %v467 = vadd.s32 %v460, 56
        %v468 = vadd.s32 %v460, 64
        %v469 = vadd.s32 %v460, 72
        %v470 = vadd.s32 %v460, 80
        %v471 = vadd.s32 %v460, 88
        %v472 = vadd.s32 %v460, 96
        %v473 = vadd.s32 %v460, 104
        %v474 = vadd.s32 %v460, 112
        %v475 = vadd.s32 %v460, 120
        %v476 = vld [vmem:[%s437] sm:$0x1]
        %v477 = vlaneseq
        %v478 = vshrl.u32 %v477, 7
        %v479 = vsub.s32 0, %v478
        %v480 = vrot.slane %v476, %v479
        %vm481 = vcmp.eq.s32.totalorder %v460, %v480
        %vm482 = vcmp.eq.s32.totalorder %v461, %v480
        %vm483 = vcmp.eq.s32.totalorder %v462, %v480
        %vm484 = vcmp.eq.s32.totalorder %v463, %v480
        %vm485 = vcmp.eq.s32.totalorder %v464, %v480
        %vm486 = vcmp.eq.s32.totalorder %v465, %v480
        %vm487 = vcmp.eq.s32.totalorder %v466, %v480
        %vm488 = vcmp.eq.s32.totalorder %v467, %v480
        %vm489 = vcmp.eq.s32.totalorder %v468, %v480
        %vm490 = vcmp.eq.s32.totalorder %v469, %v480
        %vm491 = vcmp.eq.s32.totalorder %v470, %v480
        %vm492 = vcmp.eq.s32.totalorder %v471, %v480
        %vm493 = vcmp.eq.s32.totalorder %v472, %v480
        %vm494 = vcmp.eq.s32.totalorder %v473, %v480
        %vm495 = vcmp.eq.s32.totalorder %v474, %v480
        %vm496 = vcmp.eq.s32.totalorder %v475, %v480
        %v497 = vsel %vm481, 1, 0
        %v498 = vsel %vm482, 1, 0
        %v499 = vsel %vm483, 1, 0
        %v500 = vsel %vm484, 1, 0
        %v501 = vsel %vm485, 1, 0
        %v502 = vsel %vm486, 1, 0
        %v503 = vsel %vm487, 1, 0
        %v504 = vsel %vm488, 1, 0
        %v505 = vsel %vm489, 1, 0
        %v506 = vsel %vm490, 1, 0
        %v507 = vsel %vm491, 1, 0
        %v508 = vsel %vm492, 1, 0
        %v509 = vsel %vm493, 1, 0
        %v510 = vsel %vm494, 1, 0
        %v511 = vsel %vm495, 1, 0
        %v512 = vsel %vm496, 1, 0
        %v513 = vcvt.s32.f32 %v497
        %v514 = vcvt.s32.f32 %v498
        %v515 = vcvt.s32.f32 %v499
        %v516 = vcvt.s32.f32 %v500
        %v517 = vcvt.s32.f32 %v501
        %v518 = vcvt.s32.f32 %v502
        %v519 = vcvt.s32.f32 %v503
        %v520 = vcvt.s32.f32 %v504
        %v521 = vcvt.s32.f32 %v505
        %v522 = vcvt.s32.f32 %v506
        %v523 = vcvt.s32.f32 %v507
        %v524 = vcvt.s32.f32 %v508
        %v525 = vcvt.s32.f32 %v509
        %v526 = vcvt.s32.f32 %v510
        %v527 = vcvt.s32.f32 %v511
        %v528 = vcvt.s32.f32 %v512
        %v529 = vpack.c.bf16 %v514, %v513
        %v530 = vpack.c.bf16 %v516, %v515
        %v531 = vpack.c.bf16 %v518, %v517
        %v532 = vpack.c.bf16 %v520, %v519
        %v533 = vpack.c.bf16 %v522, %v521
        %v534 = vpack.c.bf16 %v524, %v523
        %v535 = vpack.c.bf16 %v526, %v525
        %v536 = vpack.c.bf16 %v528, %v527
        %p537 = scmp.lt.s32.totalorder %s24, 1
        // Predicated region
        $region73: #{tpu_custom_call.1} parent=67 // pred_check
          %p538 = pneg %p537
        $region74: #{tpu_custom_call.1} parent=67 // pred_check_branch
          %540 = sbr.rel (%p538) target = $region76
        $region75: #{tpu_custom_call.1} parent=67 // pred_region
          %v541 = vld [vmem:[%s427] sm:$0xff]
          %v542 = vld [vmem:[%s427 + $0x8] sm:$0xff]
          %v543 = vld [vmem:[%s427 + $0x10] sm:$0xff]
          %v544 = vld [vmem:[%s427 + $0x18] sm:$0xff]
          %v545 = vld [vmem:[%s427 + $0x20] sm:$0xff]
          %v546 = vld [vmem:[%s427 + $0x28] sm:$0xff]
          %v547 = vld [vmem:[%s427 + $0x30] sm:$0xff]
          %v548 = vld [vmem:[%s427 + $0x38] sm:$0xff]
          %v549 = vld [vmem:[%s427 + $0x40] sm:$0xff]
          %v550 = vld [vmem:[%s427 + $0x48] sm:$0xff]
          %v551 = vld [vmem:[%s427 + $0x50] sm:$0xff]
          %v552 = vld [vmem:[%s427 + $0x58] sm:$0xff]
          %v553 = vld [vmem:[%s427 + $0x60] sm:$0xff]
          %v554 = vld [vmem:[%s427 + $0x68] sm:$0xff]
          %v555 = vld [vmem:[%s427 + $0x70] sm:$0xff]
          %v556 = vld [vmem:[%s427 + $0x78] sm:$0xff]
          %v557 = vld [vmem:[%s4] sm:$0x1]
          %559 = vset.pattern.permute.xlu0 0
          %560 = vperm.xlu0 %559, %v541
          %v561 = vpop.permute.xlu0 %560
          %564 = vset.pattern.permute.xlu0 0
          %565 = vperm.xlu0 %564, %v542
          %v566 = vpop.permute.xlu0 %565
          %569 = vset.pattern.permute.xlu0 0
          %570 = vperm.xlu0 %569, %v543
          %v571 = vpop.permute.xlu0 %570
          %574 = vset.pattern.permute.xlu0 0
          %575 = vperm.xlu0 %574, %v544
          %v576 = vpop.permute.xlu0 %575
          %579 = vset.pattern.permute.xlu0 0
          %580 = vperm.xlu0 %579, %v545
          %v581 = vpop.permute.xlu0 %580
          %584 = vset.pattern.permute.xlu0 0
          %585 = vperm.xlu0 %584, %v546
          %v586 = vpop.permute.xlu0 %585
          %589 = vset.pattern.permute.xlu0 0
          %590 = vperm.xlu0 %589, %v547
          %v591 = vpop.permute.xlu0 %590
          %594 = vset.pattern.permute.xlu0 0
          %595 = vperm.xlu0 %594, %v548
          %v596 = vpop.permute.xlu0 %595
          %599 = vset.pattern.permute.xlu0 0
          %600 = vperm.xlu0 %599, %v549
          %v601 = vpop.permute.xlu0 %600
          %604 = vset.pattern.permute.xlu0 0
          %605 = vperm.xlu0 %604, %v550
          %v606 = vpop.permute.xlu0 %605
          %609 = vset.pattern.permute.xlu0 0
          %610 = vperm.xlu0 %609, %v551
          %v611 = vpop.permute.xlu0 %610
          %614 = vset.pattern.permute.xlu0 0
          %615 = vperm.xlu0 %614, %v552
          %v616 = vpop.permute.xlu0 %615
          %619 = vset.pattern.permute.xlu0 0
          %620 = vperm.xlu0 %619, %v553
          %v621 = vpop.permute.xlu0 %620
          %624 = vset.pattern.permute.xlu0 0
          %625 = vperm.xlu0 %624, %v554
          %v626 = vpop.permute.xlu0 %625
          %629 = vset.pattern.permute.xlu0 0
          %630 = vperm.xlu0 %629, %v555
          %v631 = vpop.permute.xlu0 %630
          %634 = vset.pattern.permute.xlu0 0
          %635 = vperm.xlu0 %634, %v556
          %v636 = vpop.permute.xlu0 %635
          %v639 = vlaneseq
          %v640 = vshrl.u32 %v639, 7
          %v641 = vsub.s32 0, %v640
          %v642 = vrot.slane %v557, %v641
          %v644 = vmul.f32 %v561, %v642
          %v645 = vmul.f32 %v566, %v642
          %v646 = vmul.f32 %v571, %v642
          %v647 = vmul.f32 %v576, %v642
          %v648 = vmul.f32 %v581, %v642
          %v649 = vmul.f32 %v586, %v642
          %v650 = vmul.f32 %v591, %v642
          %v651 = vmul.f32 %v596, %v642
          %v652 = vmul.f32 %v601, %v642
          %v653 = vmul.f32 %v606, %v642
          %v654 = vmul.f32 %v611, %v642
          %v655 = vmul.f32 %v616, %v642
          %v656 = vmul.f32 %v621, %v642
          %v657 = vmul.f32 %v626, %v642
          %v658 = vmul.f32 %v631, %v642
          %v659 = vmul.f32 %v636, %v642
          %v660 = vld [vmem:[%s5] sm:$0x1]
          %v662 = vlaneseq
          %v663 = vshrl.u32 %v662, 7
          %v664 = vsub.s32 0, %v663
          %v665 = vrot.slane %v660, %v664
          %v667 = vadd.f32 %v644, %v665
          %v668 = vadd.f32 %v645, %v665
          %v669 = vadd.f32 %v646, %v665
          %v670 = vadd.f32 %v647, %v665
          %v671 = vadd.f32 %v648, %v665
          %v672 = vadd.f32 %v649, %v665
          %v673 = vadd.f32 %v650, %v665
          %v674 = vadd.f32 %v651, %v665
          %v675 = vadd.f32 %v652, %v665
          %v676 = vadd.f32 %v653, %v665
          %v677 = vadd.f32 %v654, %v665
          %v678 = vadd.f32 %v655, %v665
          %v679 = vadd.f32 %v656, %v665
          %v680 = vadd.f32 %v657, %v665
          %v681 = vadd.f32 %v658, %v665
          %v682 = vadd.f32 %v659, %v665
          %v683 = vmax.f32 %v667, 0.0
          %v684 = vmax.f32 %v668, 0.0
          %v685 = vmax.f32 %v669, 0.0
          %v686 = vmax.f32 %v670, 0.0
          %v687 = vmax.f32 %v671, 0.0
          %v688 = vmax.f32 %v672, 0.0
          %v689 = vmax.f32 %v673, 0.0
          %v690 = vmax.f32 %v674, 0.0
          %v691 = vmax.f32 %v675, 0.0
          %v692 = vmax.f32 %v676, 0.0
          %v693 = vmax.f32 %v677, 0.0
          %v694 = vmax.f32 %v678, 0.0
          %v695 = vmax.f32 %v679, 0.0
          %v696 = vmax.f32 %v680, 0.0
          %v697 = vmax.f32 %v681, 0.0
          %v698 = vmax.f32 %v682, 0.0
          %v699 = vlaneseq
          %v700 = vand.u32 %v699, 127
          %v701 = vld [vmem:[%s433] sm:$0xff]
          %v702 = vld [vmem:[%s433 + $0x8] sm:$0xff]
          %v703 = vld [vmem:[%s433 + $0x10] sm:$0xff]
          %v704 = vld [vmem:[%s433 + $0x18] sm:$0xff]
          %v705 = vld [vmem:[%s433 + $0x20] sm:$0xff]
          %v706 = vld [vmem:[%s433 + $0x28] sm:$0xff]
          %v707 = vld [vmem:[%s433 + $0x30] sm:$0xff]
          %v708 = vld [vmem:[%s433 + $0x38] sm:$0xff]
          %v709 = vld [vmem:[%s433 + $0x40] sm:$0xff]
          %v710 = vld [vmem:[%s433 + $0x48] sm:$0xff]
          %v711 = vld [vmem:[%s433 + $0x50] sm:$0xff]
          %v712 = vld [vmem:[%s433 + $0x58] sm:$0xff]
          %v713 = vld [vmem:[%s433 + $0x60] sm:$0xff]
          %v714 = vld [vmem:[%s433 + $0x68] sm:$0xff]
          %v715 = vld [vmem:[%s433 + $0x70] sm:$0xff]
          %v716 = vld [vmem:[%s433 + $0x78] sm:$0xff]
          %717 = vset.pattern.permute.xlu0 0
          %718 = vperm.xlu0 %717, %v701
          %v719 = vpop.permute.xlu0 %718
          %720 = vset.pattern.permute.xlu0 0
          %721 = vperm.xlu0 %720, %v702
          %v722 = vpop.permute.xlu0 %721
          %723 = vset.pattern.permute.xlu0 0
          %724 = vperm.xlu0 %723, %v703
          %v725 = vpop.permute.xlu0 %724
          %726 = vset.pattern.permute.xlu0 0
          %727 = vperm.xlu0 %726, %v704
          %v728 = vpop.permute.xlu0 %727
          %729 = vset.pattern.permute.xlu0 0
          %730 = vperm.xlu0 %729, %v705
          %v731 = vpop.permute.xlu0 %730
          %732 = vset.pattern.permute.xlu0 0
          %733 = vperm.xlu0 %732, %v706
          %v734 = vpop.permute.xlu0 %733
          %735 = vset.pattern.permute.xlu0 0
          %736 = vperm.xlu0 %735, %v707
          %v737 = vpop.permute.xlu0 %736
          %738 = vset.pattern.permute.xlu0 0
          %739 = vperm.xlu0 %738, %v708
          %v740 = vpop.permute.xlu0 %739
          %741 = vset.pattern.permute.xlu0 0
          %742 = vperm.xlu0 %741, %v709
          %v743 = vpop.permute.xlu0 %742
          %744 = vset.pattern.permute.xlu0 0
          %745 = vperm.xlu0 %744, %v710
          %v746 = vpop.permute.xlu0 %745
          %747 = vset.pattern.permute.xlu0 0
          %748 = vperm.xlu0 %747, %v711
          %v749 = vpop.permute.xlu0 %748
          %750 = vset.pattern.permute.xlu0 0
          %751 = vperm.xlu0 %750, %v712
          %v752 = vpop.permute.xlu0 %751
          %753 = vset.pattern.permute.xlu0 0
          %754 = vperm.xlu0 %753, %v713
          %v755 = vpop.permute.xlu0 %754
          %756 = vset.pattern.permute.xlu0 0
          %757 = vperm.xlu0 %756, %v714
          %v758 = vpop.permute.xlu0 %757
          %759 = vset.pattern.permute.xlu0 0
          %760 = vperm.xlu0 %759, %v715
          %v761 = vpop.permute.xlu0 %760
          %762 = vset.pattern.permute.xlu0 0
          %763 = vperm.xlu0 %762, %v716
          %v764 = vpop.permute.xlu0 %763
          %vm765 = vcmp.eq.s32.totalorder %v700, %v719
          %vm766 = vcmp.eq.s32.totalorder %v700, %v722
          %vm767 = vcmp.eq.s32.totalorder %v700, %v725
          %vm768 = vcmp.eq.s32.totalorder %v700, %v728
          %vm769 = vcmp.eq.s32.totalorder %v700, %v731
          %vm770 = vcmp.eq.s32.totalorder %v700, %v734
          %vm771 = vcmp.eq.s32.totalorder %v700, %v737
          %vm772 = vcmp.eq.s32.totalorder %v700, %v740
          %vm773 = vcmp.eq.s32.totalorder %v700, %v743
          %vm774 = vcmp.eq.s32.totalorder %v700, %v746
          %vm775 = vcmp.eq.s32.totalorder %v700, %v749
          %vm776 = vcmp.eq.s32.totalorder %v700, %v752
          %vm777 = vcmp.eq.s32.totalorder %v700, %v755
          %vm778 = vcmp.eq.s32.totalorder %v700, %v758
          %vm779 = vcmp.eq.s32.totalorder %v700, %v761
          %vm780 = vcmp.eq.s32.totalorder %v700, %v764
          %v781 = vsel %vm765, 1, 0
          %v782 = vsel %vm766, 1, 0
          %v783 = vsel %vm767, 1, 0
          %v784 = vsel %vm768, 1, 0
          %v785 = vsel %vm769, 1, 0
          %v786 = vsel %vm770, 1, 0
          %v787 = vsel %vm771, 1, 0
          %v788 = vsel %vm772, 1, 0
          %v789 = vsel %vm773, 1, 0
          %v790 = vsel %vm774, 1, 0
          %v791 = vsel %vm775, 1, 0
          %v792 = vsel %vm776, 1, 0
          %v793 = vsel %vm777, 1, 0
          %v794 = vsel %vm778, 1, 0
          %v795 = vsel %vm779, 1, 0
          %v796 = vsel %vm780, 1, 0
          %v797 = vcvt.s32.f32 %v781
          %v798 = vcvt.s32.f32 %v782
          %v799 = vcvt.s32.f32 %v783
          %v800 = vcvt.s32.f32 %v784
          %v801 = vcvt.s32.f32 %v785
          %v802 = vcvt.s32.f32 %v786
          %v803 = vcvt.s32.f32 %v787
          %v804 = vcvt.s32.f32 %v788
          %v805 = vcvt.s32.f32 %v789
          %v806 = vcvt.s32.f32 %v790
          %v807 = vcvt.s32.f32 %v791
          %v808 = vcvt.s32.f32 %v792
          %v809 = vcvt.s32.f32 %v793
          %v810 = vcvt.s32.f32 %v794
          %v811 = vcvt.s32.f32 %v795
          %v812 = vcvt.s32.f32 %v796
          %v813 = vpack.c.bf16 %v798, %v797
          %v814 = vpack.c.bf16 %v800, %v799
          %v815 = vpack.c.bf16 %v802, %v801
          %v816 = vpack.c.bf16 %v804, %v803
          %v817 = vpack.c.bf16 %v806, %v805
          %v818 = vpack.c.bf16 %v808, %v807
          %v819 = vpack.c.bf16 %v810, %v809
          %v820 = vpack.c.bf16 %v812, %v811
          %v821 = vld [vmem:[%s3] sm:$0xf]
          %v822 = vld [vmem:[%s3 + $0x4] sm:$0xf]
          %v823 = vld [vmem:[%s3 + $0x8] sm:$0xf]
          %v824 = vld [vmem:[%s3 + $0xc] sm:$0xf]
          %v825 = vld [vmem:[%s3 + $0x10] sm:$0xf]
          %v826 = vld [vmem:[%s3 + $0x14] sm:$0xf]
          %v827 = vld [vmem:[%s3 + $0x18] sm:$0xf]
          %v828 = vld [vmem:[%s3 + $0x1c] sm:$0xf]
          %v829 = vld [vmem:[%s3 + $0x20] sm:$0xf]
          %v830 = vld [vmem:[%s3 + $0x24] sm:$0xf]
          %v831 = vld [vmem:[%s3 + $0x28] sm:$0xf]
          %v832 = vld [vmem:[%s3 + $0x2c] sm:$0xf]
          %v833 = vld [vmem:[%s3 + $0x30] sm:$0xf]
          %v834 = vld [vmem:[%s3 + $0x34] sm:$0xf]
          %v835 = vld [vmem:[%s3 + $0x38] sm:$0xf]
          %v836 = vld [vmem:[%s3 + $0x3c] sm:$0xf]
          %v853 = vunpack.c.l.b16 %v821
          %v854 = vunpack.c.l.b16 %v822
          %v855 = vunpack.c.l.b16 %v823
          %v856 = vunpack.c.l.b16 %v824
          %v857 = vunpack.c.l.b16 %v825
          %v858 = vunpack.c.l.b16 %v826
          %v859 = vunpack.c.l.b16 %v827
          %v860 = vunpack.c.l.b16 %v828
          %v861 = vunpack.c.l.b16 %v829
          %v862 = vunpack.c.l.b16 %v830
          %v863 = vunpack.c.l.b16 %v831
          %v864 = vunpack.c.l.b16 %v832
          %v865 = vunpack.c.l.b16 %v833
          %v866 = vunpack.c.l.b16 %v834
          %v867 = vunpack.c.l.b16 %v835
          %v868 = vunpack.c.l.b16 %v836
          %v869 = vpack.c.b16 %v854, %v853
          %v870 = vpack.c.b16 %v856, %v855
          %v871 = vpack.c.b16 %v858, %v857
          %v872 = vpack.c.b16 %v860, %v859
          %v873 = vpack.c.b16 %v862, %v861
          %v874 = vpack.c.b16 %v864, %v863
          %v875 = vpack.c.b16 %v866, %v865
          %v876 = vpack.c.b16 %v868, %v867
          %885 = vmatprep.subr.bf16.mxu0 0
          %886 = vmatpush1.bf16.msra.mxu0 %v869
          %887 = vmatprep.subr.bf16.mxu0 0
          %888 = vmatpush1.bf16.msra.mxu0 %v870
          %889 = vmatprep.subr.bf16.mxu0 0
          %890 = vmatpush1.bf16.msra.mxu0 %v871
          %891 = vmatprep.subr.bf16.mxu0 0
          %892 = vmatpush1.bf16.msra.mxu0 %v872
          %893 = vmatprep.subr.bf16.mxu0 0
          %894 = vmatpush1.bf16.msra.mxu0 %v873
          %895 = vmatprep.subr.bf16.mxu0 0
          %896 = vmatpush1.bf16.msra.mxu0 %v874
          %897 = vmatprep.subr.bf16.mxu0 0
          %898 = vmatpush1.bf16.msra.mxu0 %v875
          %899 = vmatprep.subr.bf16.mxu0 0
          %900 = vmatpush1.bf16.msra.mxu0 %v876
          %901 = vmatprep.subr.bf16.mxu0 0
          %902 = vmatpush1.bf16.msra.mxu0 0
          %903 = vmatprep.subr.bf16.mxu0 0
          %904 = vmatpush1.bf16.msra.mxu0 0
          %905 = vmatprep.subr.bf16.mxu0 0
          %906 = vmatpush1.bf16.msra.mxu0 0
          %907 = vmatprep.subr.bf16.mxu0 0
          %908 = vmatpush1.bf16.msra.mxu0 0
          %909 = vmatprep.subr.bf16.mxu0 0
          %910 = vmatpush1.bf16.msra.mxu0 0
          %911 = vmatprep.subr.bf16.mxu0 0
          %912 = vmatpush1.bf16.msra.mxu0 0
          %913 = vmatprep.subr.bf16.mxu0 0
          %914 = vmatpush1.bf16.msra.mxu0 0
          %915 = vmatprep.subr.bf16.mxu0 0
          %916 = vmatpush1.bf16.msra.mxu0 0
          %917 = vmatprep.mubr.bf16.mxu0 0
          %918 = vmatmul.mubr.bf16.gmra.mrb[0].mxu0 %v813
          %v919 = vpop.f32.mrb[0].mxu0
          %v920 = vadd.f32 0.0, %v919
          %v921 = vpop.f32.mrb[0].mxu0
          %v922 = vpop.f32.mrb[0].mxu0
          %v923 = vadd.f32 0.0, %v922
          %v924 = vpop.f32.mrb[0].mxu0
          %925 = vmatprep.mubr.bf16.mxu0 0
          %926 = vmatmul.mubr.bf16.gmra.mrb[0].mxu0 %v814
          %v927 = vpop.f32.mrb[0].mxu0
          %v928 = vadd.f32 0.0, %v927
          %v929 = vpop.f32.mrb[0].mxu0
          %v930 = vpop.f32.mrb[0].mxu0
          %v931 = vadd.f32 0.0, %v930
          %v932 = vpop.f32.mrb[0].mxu0
          %933 = vmatprep.mubr.bf16.mxu0 0
          %934 = vmatmul.mubr.bf16.gmra.mrb[0].mxu0 %v815
          %v935 = vpop.f32.mrb[0].mxu0
          %v936 = vadd.f32 0.0, %v935
          %v937 = vpop.f32.mrb[0].mxu0
          %v938 = vpop.f32.mrb[0].mxu0
          %v939 = vadd.f32 0.0, %v938
          %v940 = vpop.f32.mrb[0].mxu0
          %941 = vmatprep.mubr.bf16.mxu0 0
          %942 = vmatmul.mubr.bf16.gmra.mrb[0].mxu0 %v816
          %v943 = vpop.f32.mrb[0].mxu0
          %v944 = vadd.f32 0.0, %v943
          %v945 = vpop.f32.mrb[0].mxu0
          %v946 = vpop.f32.mrb[0].mxu0
          %v947 = vadd.f32 0.0, %v946
          %v948 = vpop.f32.mrb[0].mxu0
          %949 = vmatprep.mubr.bf16.mxu0 0
          %950 = vmatmul.mubr.bf16.gmra.mrb[0].mxu0 %v817
          %v951 = vpop.f32.mrb[0].mxu0
          %v952 = vadd.f32 0.0, %v951
          %v953 = vpop.f32.mrb[0].mxu0
          %v954 = vpop.f32.mrb[0].mxu0
          %v955 = vadd.f32 0.0, %v954
          %v956 = vpop.f32.mrb[0].mxu0
          %957 = vmatprep.mubr.bf16.mxu0 0
          %958 = vmatmul.mubr.bf16.gmra.mrb[0].mxu0 %v818
          %v959 = vpop.f32.mrb[0].mxu0
          %v960 = vadd.f32 0.0, %v959
          %v961 = vpop.f32.mrb[0].mxu0
          %v962 = vpop.f32.mrb[0].mxu0
          %v963 = vadd.f32 0.0, %v962
          %v964 = vpop.f32.mrb[0].mxu0
          %965 = vmatprep.mubr.bf16.mxu0 0
          %966 = vmatmul.mubr.bf16.gmra.mrb[0].mxu0 %v819
          %v967 = vpop.f32.mrb[0].mxu0
          %v968 = vadd.f32 0.0, %v967
          %v969 = vpop.f32.mrb[0].mxu0
          %v970 = vpop.f32.mrb[0].mxu0
          %v971 = vadd.f32 0.0, %v970
          %v972 = vpop.f32.mrb[0].mxu0
          %973 = vmatprep.mubr.bf16.mxu0 0
          %974 = vmatmul.mubr.bf16.gmra.mrb[0].mxu0 %v820
          %v975 = vpop.f32.mrb[0].mxu0
          %v976 = vadd.f32 0.0, %v975
          %v977 = vpop.f32.mrb[0].mxu0
          %v978 = vpop.f32.mrb[0].mxu0
          %v979 = vadd.f32 0.0, %v978
          %v980 = vpop.f32.mrb[0].mxu0
          %981 = vdwg.mxu0
          %v982 = vmul.f32 %v920, %v683
          %v983 = vmul.f32 %v923, %v684
          %v984 = vmul.f32 %v928, %v685
          %v985 = vmul.f32 %v931, %v686
          %v986 = vmul.f32 %v936, %v687
          %v987 = vmul.f32 %v939, %v688
          %v988 = vmul.f32 %v944, %v689
          %v989 = vmul.f32 %v947, %v690
          %v990 = vmul.f32 %v952, %v691
          %v991 = vmul.f32 %v955, %v692
          %v992 = vmul.f32 %v960, %v693
          %v993 = vmul.f32 %v963, %v694
          %v994 = vmul.f32 %v968, %v695
          %v995 = vmul.f32 %v971, %v696
          %v996 = vmul.f32 %v976, %v697
          %v997 = vmul.f32 %v979, %v698
          %v998 = vpack.c.bf16 %v983, %v982
          %v999 = vpack.c.bf16 %v985, %v984
          %v1000 = vpack.c.bf16 %v987, %v986
          %v1001 = vpack.c.bf16 %v989, %v988
          %v1002 = vpack.c.bf16 %v991, %v990
          %v1003 = vpack.c.bf16 %v993, %v992
          %v1004 = vpack.c.bf16 %v995, %v994
          %v1005 = vpack.c.bf16 %v997, %v996
          %v1006 = vld [vmem:[%s6] sm:$0xf]
          %v1007 = vld [vmem:[%s6 + $0x4] sm:$0xf]
          %v1008 = vld [vmem:[%s6 + $0x8] sm:$0xf]
          %v1009 = vld [vmem:[%s6 + $0xc] sm:$0xf]
          %v1010 = vld [vmem:[%s6 + $0x10] sm:$0xf]
          %v1011 = vld [vmem:[%s6 + $0x14] sm:$0xf]
          %v1012 = vld [vmem:[%s6 + $0x18] sm:$0xf]
          %v1013 = vld [vmem:[%s6 + $0x1c] sm:$0xf]
          %v1014 = vld [vmem:[%s6 + $0x20] sm:$0xf]
          %v1015 = vld [vmem:[%s6 + $0x24] sm:$0xf]
          %v1016 = vld [vmem:[%s6 + $0x28] sm:$0xf]
          %v1017 = vld [vmem:[%s6 + $0x2c] sm:$0xf]
          %v1018 = vld [vmem:[%s6 + $0x30] sm:$0xf]
          %v1019 = vld [vmem:[%s6 + $0x34] sm:$0xf]
          %v1020 = vld [vmem:[%s6 + $0x38] sm:$0xf]
          %v1021 = vld [vmem:[%s6 + $0x3c] sm:$0xf]
          %v1022 = vld [vmem:[%s7] sm:$0x1]
          %1024 = vset.pattern.permute.xlu0 0
          %1025 = vperm.xlu0 %1024, %v920
          %v1026 = vpop.permute.xlu0 %1025
          %1029 = vset.pattern.permute.xlu0 0
          %1030 = vperm.xlu0 %1029, %v923
          %v1031 = vpop.permute.xlu0 %1030
          %1034 = vset.pattern.permute.xlu0 0
          %1035 = vperm.xlu0 %1034, %v928
          %v1036 = vpop.permute.xlu0 %1035
          %1039 = vset.pattern.permute.xlu0 0
          %1040 = vperm.xlu0 %1039, %v931
          %v1041 = vpop.permute.xlu0 %1040
          %1044 = vset.pattern.permute.xlu0 0
          %1045 = vperm.xlu0 %1044, %v936
          %v1046 = vpop.permute.xlu0 %1045
          %1049 = vset.pattern.permute.xlu0 0
          %1050 = vperm.xlu0 %1049, %v939
          %v1051 = vpop.permute.xlu0 %1050
          %1054 = vset.pattern.permute.xlu0 0
          %1055 = vperm.xlu0 %1054, %v944
          %v1056 = vpop.permute.xlu0 %1055
          %1059 = vset.pattern.permute.xlu0 0
          %1060 = vperm.xlu0 %1059, %v947
          %v1061 = vpop.permute.xlu0 %1060
          %1064 = vset.pattern.permute.xlu0 0
          %1065 = vperm.xlu0 %1064, %v952
          %v1066 = vpop.permute.xlu0 %1065
          %1069 = vset.pattern.permute.xlu0 0
          %1070 = vperm.xlu0 %1069, %v955
          %v1071 = vpop.permute.xlu0 %1070
          %1074 = vset.pattern.permute.xlu0 0
          %1075 = vperm.xlu0 %1074, %v960
          %v1076 = vpop.permute.xlu0 %1075
          %1079 = vset.pattern.permute.xlu0 0
          %1080 = vperm.xlu0 %1079, %v963
          %v1081 = vpop.permute.xlu0 %1080
          %1084 = vset.pattern.permute.xlu0 0
          %1085 = vperm.xlu0 %1084, %v968
          %v1086 = vpop.permute.xlu0 %1085
          %1089 = vset.pattern.permute.xlu0 0
          %1090 = vperm.xlu0 %1089, %v971
          %v1091 = vpop.permute.xlu0 %1090
          %1094 = vset.pattern.permute.xlu0 0
          %1095 = vperm.xlu0 %1094, %v976
          %v1096 = vpop.permute.xlu0 %1095
          %1099 = vset.pattern.permute.xlu0 0
          %1100 = vperm.xlu0 %1099, %v979
          %v1101 = vpop.permute.xlu0 %1100
          %v1103 = vlaneseq
          %v1104 = vshrl.u32 %v1103, 7
          %v1105 = vsub.s32 0, %v1104
          %v1106 = vrot.slane %v1022, %v1105
          %v1107 = vmul.f32 %v1026, %v1106
          %v1108 = vmul.f32 %v1031, %v1106
          %v1109 = vmul.f32 %v1036, %v1106
          %v1110 = vmul.f32 %v1041, %v1106
          %v1111 = vmul.f32 %v1046, %v1106
          %v1112 = vmul.f32 %v1051, %v1106
          %v1113 = vmul.f32 %v1056, %v1106
          %v1114 = vmul.f32 %v1061, %v1106
          %v1115 = vmul.f32 %v1066, %v1106
          %v1116 = vmul.f32 %v1071, %v1106
          %v1117 = vmul.f32 %v1076, %v1106
          %v1118 = vmul.f32 %v1081, %v1106
          %v1119 = vmul.f32 %v1086, %v1106
          %v1120 = vmul.f32 %v1091, %v1106
          %v1121 = vmul.f32 %v1096, %v1106
          %v1122 = vmul.f32 %v1101, %v1106
          %v1139 = vunpack.c.l.b16 %v1006
          %v1140 = vunpack.c.l.b16 %v1007
          %v1141 = vunpack.c.l.b16 %v1008
          %v1142 = vunpack.c.l.b16 %v1009
          %v1143 = vunpack.c.l.b16 %v1010
          %v1144 = vunpack.c.l.b16 %v1011
          %v1145 = vunpack.c.l.b16 %v1012
          %v1146 = vunpack.c.l.b16 %v1013
          %v1147 = vunpack.c.l.b16 %v1014
          %v1148 = vunpack.c.l.b16 %v1015
          %v1149 = vunpack.c.l.b16 %v1016
          %v1150 = vunpack.c.l.b16 %v1017
          %v1151 = vunpack.c.l.b16 %v1018
          %v1152 = vunpack.c.l.b16 %v1019
          %v1153 = vunpack.c.l.b16 %v1020
          %v1154 = vunpack.c.l.b16 %v1021
          %v1155 = vpack.c.b16 %v1140, %v1139
          %v1156 = vpack.c.b16 %v1142, %v1141
          %v1157 = vpack.c.b16 %v1144, %v1143
          %v1158 = vpack.c.b16 %v1146, %v1145
          %v1159 = vpack.c.b16 %v1148, %v1147
          %v1160 = vpack.c.b16 %v1150, %v1149
          %v1161 = vpack.c.b16 %v1152, %v1151
          %v1162 = vpack.c.b16 %v1154, %v1153
          %1171 = vmatprep.subr.bf16.mxu0 0
          %1172 = vmatpush1.bf16.msra.mxu0 %v1155
          %1173 = vmatprep.subr.bf16.mxu0 0
          %1174 = vmatpush1.bf16.msra.mxu0 %v1156
          %1175 = vmatprep.subr.bf16.mxu0 0
          %1176 = vmatpush1.bf16.msra.mxu0 %v1157
          %1177 = vmatprep.subr.bf16.mxu0 0
          %1178 = vmatpush1.bf16.msra.mxu0 %v1158
          %1179 = vmatprep.subr.bf16.mxu0 0
          %1180 = vmatpush1.bf16.msra.mxu0 %v1159
          %1181 = vmatprep.subr.bf16.mxu0 0
          %1182 = vmatpush1.bf16.msra.mxu0 %v1160
          %1183 = vmatprep.subr.bf16.mxu0 0
          %1184 = vmatpush1.bf16.msra.mxu0 %v1161
          %1185 = vmatprep.subr.bf16.mxu0 0
          %1186 = vmatpush1.bf16.msra.mxu0 %v1162
          %1187 = vmatprep.subr.bf16.mxu0 0
          %1188 = vmatpush1.bf16.msra.mxu0 0
          %1189 = vmatprep.subr.bf16.mxu0 0
          %1190 = vmatpush1.bf16.msra.mxu0 0
          %1191 = vmatprep.subr.bf16.mxu0 0
          %1192 = vmatpush1.bf16.msra.mxu0 0
          %1193 = vmatprep.subr.bf16.mxu0 0
          %1194 = vmatpush1.bf16.msra.mxu0 0
          %1195 = vmatprep.subr.bf16.mxu0 0
          %1196 = vmatpush1.bf16.msra.mxu0 0
          %1197 = vmatprep.subr.bf16.mxu0 0
          %1198 = vmatpush1.bf16.msra.mxu0 0
          %1199 = vmatprep.subr.bf16.mxu0 0
          %1200 = vmatpush1.bf16.msra.mxu0 0
          %1201 = vmatprep.subr.bf16.mxu0 0
          %1202 = vmatpush1.bf16.msra.mxu0 0
          %1203 = vmatprep.mubr.bf16.mxu0 0
          %1204 = vmatmul.mubr.bf16.gmra.mrb[0].mxu0 %v998
          %v1205 = vpop.f32.mrb[0].mxu0
          %v1206 = vadd.f32 %v1107, %v1205
          %v1207 = vpop.f32.mrb[0].mxu0
          %v1208 = vpop.f32.mrb[0].mxu0
          %v1209 = vadd.f32 %v1108, %v1208
          %v1210 = vpop.f32.mrb[0].mxu0
          %1211 = vmatprep.mubr.bf16.mxu0 0
          %1212 = vmatmul.mubr.bf16.gmra.mrb[0].mxu0 %v999
          %v1213 = vpop.f32.mrb[0].mxu0
          %v1214 = vadd.f32 %v1109, %v1213
          %v1215 = vpop.f32.mrb[0].mxu0
          %v1216 = vpop.f32.mrb[0].mxu0
          %v1217 = vadd.f32 %v1110, %v1216
          %v1218 = vpop.f32.mrb[0].mxu0
          %1219 = vmatprep.mubr.bf16.mxu0 0
          %1220 = vmatmul.mubr.bf16.gmra.mrb[0].mxu0 %v1000
          %v1221 = vpop.f32.mrb[0].mxu0
          %v1222 = vadd.f32 %v1111, %v1221
          %v1223 = vpop.f32.mrb[0].mxu0
          %v1224 = vpop.f32.mrb[0].mxu0
          %v1225 = vadd.f32 %v1112, %v1224
          %v1226 = vpop.f32.mrb[0].mxu0
          %1227 = vmatprep.mubr.bf16.mxu0 0
          %1228 = vmatmul.mubr.bf16.gmra.mrb[0].mxu0 %v1001
          %v1229 = vpop.f32.mrb[0].mxu0
          %v1230 = vadd.f32 %v1113, %v1229
          %v1231 = vpop.f32.mrb[0].mxu0
          %v1232 = vpop.f32.mrb[0].mxu0
          %v1233 = vadd.f32 %v1114, %v1232
          %v1234 = vpop.f32.mrb[0].mxu0
          %1235 = vmatprep.mubr.bf16.mxu0 0
          %1236 = vmatmul.mubr.bf16.gmra.mrb[0].mxu0 %v1002
          %v1237 = vpop.f32.mrb[0].mxu0
          %v1238 = vadd.f32 %v1115, %v1237
          %v1239 = vpop.f32.mrb[0].mxu0
          %v1240 = vpop.f32.mrb[0].mxu0
          %v1241 = vadd.f32 %v1116, %v1240
          %v1242 = vpop.f32.mrb[0].mxu0
          %1243 = vmatprep.mubr.bf16.mxu0 0
          %1244 = vmatmul.mubr.bf16.gmra.mrb[0].mxu0 %v1003
          %v1245 = vpop.f32.mrb[0].mxu0
          %v1246 = vadd.f32 %v1117, %v1245
          %v1247 = vpop.f32.mrb[0].mxu0
          %v1248 = vpop.f32.mrb[0].mxu0
          %v1249 = vadd.f32 %v1118, %v1248
          %v1250 = vpop.f32.mrb[0].mxu0
          %1251 = vmatprep.mubr.bf16.mxu0 0
          %1252 = vmatmul.mubr.bf16.gmra.mrb[0].mxu0 %v1004
          %v1253 = vpop.f32.mrb[0].mxu0
          %v1254 = vadd.f32 %v1119, %v1253
          %v1255 = vpop.f32.mrb[0].mxu0
          %v1256 = vpop.f32.mrb[0].mxu0
          %v1257 = vadd.f32 %v1120, %v1256
          %v1258 = vpop.f32.mrb[0].mxu0
          %1259 = vmatprep.mubr.bf16.mxu0 0
          %1260 = vmatmul.mubr.bf16.gmra.mrb[0].mxu0 %v1005
          %v1261 = vpop.f32.mrb[0].mxu0
          %v1262 = vadd.f32 %v1121, %v1261
          %v1263 = vpop.f32.mrb[0].mxu0
          %v1264 = vpop.f32.mrb[0].mxu0
          %v1265 = vadd.f32 %v1122, %v1264
          %v1266 = vpop.f32.mrb[0].mxu0
          %1267 = vdwg.mxu0
          %v1268 = vld [vmem:[%s7 + $0x1] sm:$0x1]
          %1269 = vset.pattern.permute.xlu0 32
          %1270 = vperm.xlu0 %1269, %v920
          %v1271 = vpop.permute.xlu0 %1270
          %1273 = vset.pattern.permute.xlu0 32
          %1274 = vperm.xlu0 %1273, %v923
          %v1275 = vpop.permute.xlu0 %1274
          %1277 = vset.pattern.permute.xlu0 32
          %1278 = vperm.xlu0 %1277, %v928
          %v1279 = vpop.permute.xlu0 %1278
          %1281 = vset.pattern.permute.xlu0 32
          %1282 = vperm.xlu0 %1281, %v931
          %v1283 = vpop.permute.xlu0 %1282
          %1285 = vset.pattern.permute.xlu0 32
          %1286 = vperm.xlu0 %1285, %v936
          %v1287 = vpop.permute.xlu0 %1286
          %1289 = vset.pattern.permute.xlu0 32
          %1290 = vperm.xlu0 %1289, %v939
          %v1291 = vpop.permute.xlu0 %1290
          %1293 = vset.pattern.permute.xlu0 32
          %1294 = vperm.xlu0 %1293, %v944
          %v1295 = vpop.permute.xlu0 %1294
          %1297 = vset.pattern.permute.xlu0 32
          %1298 = vperm.xlu0 %1297, %v947
          %v1299 = vpop.permute.xlu0 %1298
          %1301 = vset.pattern.permute.xlu0 32
          %1302 = vperm.xlu0 %1301, %v952
          %v1303 = vpop.permute.xlu0 %1302
          %1305 = vset.pattern.permute.xlu0 32
          %1306 = vperm.xlu0 %1305, %v955
          %v1307 = vpop.permute.xlu0 %1306
          %1309 = vset.pattern.permute.xlu0 32
          %1310 = vperm.xlu0 %1309, %v960
          %v1311 = vpop.permute.xlu0 %1310
          %1313 = vset.pattern.permute.xlu0 32
          %1314 = vperm.xlu0 %1313, %v963
          %v1315 = vpop.permute.xlu0 %1314
          %1317 = vset.pattern.permute.xlu0 32
          %1318 = vperm.xlu0 %1317, %v968
          %v1319 = vpop.permute.xlu0 %1318
          %1321 = vset.pattern.permute.xlu0 32
          %1322 = vperm.xlu0 %1321, %v971
          %v1323 = vpop.permute.xlu0 %1322
          %1325 = vset.pattern.permute.xlu0 32
          %1326 = vperm.xlu0 %1325, %v976
          %v1327 = vpop.permute.xlu0 %1326
          %1329 = vset.pattern.permute.xlu0 32
          %1330 = vperm.xlu0 %1329, %v979
          %v1331 = vpop.permute.xlu0 %1330
          %v1333 = vlaneseq
          %v1334 = vshrl.u32 %v1333, 7
          %v1335 = vsub.s32 0, %v1334
          %v1336 = vrot.slane %v1268, %v1335
          %v1337 = vmul.f32 %v1271, %v1336
          %v1338 = vmul.f32 %v1275, %v1336
          %v1339 = vmul.f32 %v1279, %v1336
          %v1340 = vmul.f32 %v1283, %v1336
          %v1341 = vmul.f32 %v1287, %v1336
          %v1342 = vmul.f32 %v1291, %v1336
          %v1343 = vmul.f32 %v1295, %v1336
          %v1344 = vmul.f32 %v1299, %v1336
          %v1345 = vmul.f32 %v1303, %v1336
          %v1346 = vmul.f32 %v1307, %v1336
          %v1347 = vmul.f32 %v1311, %v1336
          %v1348 = vmul.f32 %v1315, %v1336
          %v1349 = vmul.f32 %v1319, %v1336
          %v1350 = vmul.f32 %v1323, %v1336
          %v1351 = vmul.f32 %v1327, %v1336
          %v1352 = vmul.f32 %v1331, %v1336
          %v1353 = vadd.f32 %v1206, %v1337
          %v1354 = vadd.f32 %v1209, %v1338
          %v1355 = vadd.f32 %v1214, %v1339
          %v1356 = vadd.f32 %v1217, %v1340
          %v1357 = vadd.f32 %v1222, %v1341
          %v1358 = vadd.f32 %v1225, %v1342
          %v1359 = vadd.f32 %v1230, %v1343
          %v1360 = vadd.f32 %v1233, %v1344
          %v1361 = vadd.f32 %v1238, %v1345
          %v1362 = vadd.f32 %v1241, %v1346
          %v1363 = vadd.f32 %v1246, %v1347
          %v1364 = vadd.f32 %v1249, %v1348
          %v1365 = vadd.f32 %v1254, %v1349
          %v1366 = vadd.f32 %v1257, %v1350
          %v1367 = vadd.f32 %v1262, %v1351
          %v1368 = vadd.f32 %v1265, %v1352
          %v1369 = vld [vmem:[%s7 + $0x2] sm:$0x1]
          %1370 = vset.pattern.permute.xlu0 64
          %1371 = vperm.xlu0 %1370, %v920
          %v1372 = vpop.permute.xlu0 %1371
          %1374 = vset.pattern.permute.xlu0 64
          %1375 = vperm.xlu0 %1374, %v923
          %v1376 = vpop.permute.xlu0 %1375
          %1378 = vset.pattern.permute.xlu0 64
          %1379 = vperm.xlu0 %1378, %v928
          %v1380 = vpop.permute.xlu0 %1379
          %1382 = vset.pattern.permute.xlu0 64
          %1383 = vperm.xlu0 %1382, %v931
          %v1384 = vpop.permute.xlu0 %1383
          %1386 = vset.pattern.permute.xlu0 64
          %1387 = vperm.xlu0 %1386, %v936
          %v1388 = vpop.permute.xlu0 %1387
          %1390 = vset.pattern.permute.xlu0 64
          %1391 = vperm.xlu0 %1390, %v939
          %v1392 = vpop.permute.xlu0 %1391
          %1394 = vset.pattern.permute.xlu0 64
          %1395 = vperm.xlu0 %1394, %v944
          %v1396 = vpop.permute.xlu0 %1395
          %1398 = vset.pattern.permute.xlu0 64
          %1399 = vperm.xlu0 %1398, %v947
          %v1400 = vpop.permute.xlu0 %1399
          %1402 = vset.pattern.permute.xlu0 64
          %1403 = vperm.xlu0 %1402, %v952
          %v1404 = vpop.permute.xlu0 %1403
          %1406 = vset.pattern.permute.xlu0 64
          %1407 = vperm.xlu0 %1406, %v955
          %v1408 = vpop.permute.xlu0 %1407
          %1410 = vset.pattern.permute.xlu0 64
          %1411 = vperm.xlu0 %1410, %v960
          %v1412 = vpop.permute.xlu0 %1411
          %1414 = vset.pattern.permute.xlu0 64
          %1415 = vperm.xlu0 %1414, %v963
          %v1416 = vpop.permute.xlu0 %1415
          %1418 = vset.pattern.permute.xlu0 64
          %1419 = vperm.xlu0 %1418, %v968
          %v1420 = vpop.permute.xlu0 %1419
          %1422 = vset.pattern.permute.xlu0 64
          %1423 = vperm.xlu0 %1422, %v971
          %v1424 = vpop.permute.xlu0 %1423
          %1426 = vset.pattern.permute.xlu0 64
          %1427 = vperm.xlu0 %1426, %v976
          %v1428 = vpop.permute.xlu0 %1427
          %1430 = vset.pattern.permute.xlu0 64
          %1431 = vperm.xlu0 %1430, %v979
          %v1432 = vpop.permute.xlu0 %1431
          %v1434 = vlaneseq
          %v1435 = vshrl.u32 %v1434, 7
          %v1436 = vsub.s32 0, %v1435
          %v1437 = vrot.slane %v1369, %v1436
          %v1438 = vmul.f32 %v1372, %v1437
          %v1439 = vmul.f32 %v1376, %v1437
          %v1440 = vmul.f32 %v1380, %v1437
          %v1441 = vmul.f32 %v1384, %v1437
          %v1442 = vmul.f32 %v1388, %v1437
          %v1443 = vmul.f32 %v1392, %v1437
          %v1444 = vmul.f32 %v1396, %v1437
          %v1445 = vmul.f32 %v1400, %v1437
          %v1446 = vmul.f32 %v1404, %v1437
          %v1447 = vmul.f32 %v1408, %v1437
          %v1448 = vmul.f32 %v1412, %v1437
          %v1449 = vmul.f32 %v1416, %v1437
          %v1450 = vmul.f32 %v1420, %v1437
          %v1451 = vmul.f32 %v1424, %v1437
          %v1452 = vmul.f32 %v1428, %v1437
          %v1453 = vmul.f32 %v1432, %v1437
          %v1454 = vadd.f32 %v1353, %v1438
          %v1455 = vadd.f32 %v1354, %v1439
          %v1456 = vadd.f32 %v1355, %v1440
          %v1457 = vadd.f32 %v1356, %v1441
          %v1458 = vadd.f32 %v1357, %v1442
          %v1459 = vadd.f32 %v1358, %v1443
          %v1460 = vadd.f32 %v1359, %v1444
          %v1461 = vadd.f32 %v1360, %v1445
          %v1462 = vadd.f32 %v1361, %v1446
          %v1463 = vadd.f32 %v1362, %v1447
          %v1464 = vadd.f32 %v1363, %v1448
          %v1465 = vadd.f32 %v1364, %v1449
          %v1466 = vadd.f32 %v1365, %v1450
          %v1467 = vadd.f32 %v1366, %v1451
          %v1468 = vadd.f32 %v1367, %v1452
          %v1469 = vadd.f32 %v1368, %v1453
          %v1470 = vld [vmem:[%s7 + $0x3] sm:$0x1]
          %1471 = vset.pattern.permute.xlu0 96
          %1472 = vperm.xlu0 %1471, %v920
          %v1473 = vpop.permute.xlu0 %1472
          %1475 = vset.pattern.permute.xlu0 96
          %1476 = vperm.xlu0 %1475, %v923
          %v1477 = vpop.permute.xlu0 %1476
          %1479 = vset.pattern.permute.xlu0 96
          %1480 = vperm.xlu0 %1479, %v928
          %v1481 = vpop.permute.xlu0 %1480
          %1483 = vset.pattern.permute.xlu0 96
          %1484 = vperm.xlu0 %1483, %v931
          %v1485 = vpop.permute.xlu0 %1484
          %1487 = vset.pattern.permute.xlu0 96
          %1488 = vperm.xlu0 %1487, %v936
          %v1489 = vpop.permute.xlu0 %1488
          %1491 = vset.pattern.permute.xlu0 96
          %1492 = vperm.xlu0 %1491, %v939
          %v1493 = vpop.permute.xlu0 %1492
          %1495 = vset.pattern.permute.xlu0 96
          %1496 = vperm.xlu0 %1495, %v944
          %v1497 = vpop.permute.xlu0 %1496
          %1499 = vset.pattern.permute.xlu0 96
          %1500 = vperm.xlu0 %1499, %v947
          %v1501 = vpop.permute.xlu0 %1500
          %1503 = vset.pattern.permute.xlu0 96
          %1504 = vperm.xlu0 %1503, %v952
          %v1505 = vpop.permute.xlu0 %1504
          %1507 = vset.pattern.permute.xlu0 96
          %1508 = vperm.xlu0 %1507, %v955
          %v1509 = vpop.permute.xlu0 %1508
          %1511 = vset.pattern.permute.xlu0 96
          %1512 = vperm.xlu0 %1511, %v960
          %v1513 = vpop.permute.xlu0 %1512
          %1515 = vset.pattern.permute.xlu0 96
          %1516 = vperm.xlu0 %1515, %v963
          %v1517 = vpop.permute.xlu0 %1516
          %1519 = vset.pattern.permute.xlu0 96
          %1520 = vperm.xlu0 %1519, %v968
          %v1521 = vpop.permute.xlu0 %1520
          %1523 = vset.pattern.permute.xlu0 96
          %1524 = vperm.xlu0 %1523, %v971
          %v1525 = vpop.permute.xlu0 %1524
          %1527 = vset.pattern.permute.xlu0 96
          %1528 = vperm.xlu0 %1527, %v976
          %v1529 = vpop.permute.xlu0 %1528
          %1531 = vset.pattern.permute.xlu0 96
          %1532 = vperm.xlu0 %1531, %v979
          %v1533 = vpop.permute.xlu0 %1532
          %v1535 = vlaneseq
          %v1536 = vshrl.u32 %v1535, 7
          %v1537 = vsub.s32 0, %v1536
          %v1538 = vrot.slane %v1470, %v1537
          %v1539 = vmul.f32 %v1473, %v1538
          %v1540 = vmul.f32 %v1477, %v1538
          %v1541 = vmul.f32 %v1481, %v1538
          %v1542 = vmul.f32 %v1485, %v1538
          %v1543 = vmul.f32 %v1489, %v1538
          %v1544 = vmul.f32 %v1493, %v1538
          %v1545 = vmul.f32 %v1497, %v1538
          %v1546 = vmul.f32 %v1501, %v1538
          %v1547 = vmul.f32 %v1505, %v1538
          %v1548 = vmul.f32 %v1509, %v1538
          %v1549 = vmul.f32 %v1513, %v1538
          %v1550 = vmul.f32 %v1517, %v1538
          %v1551 = vmul.f32 %v1521, %v1538
          %v1552 = vmul.f32 %v1525, %v1538
          %v1553 = vmul.f32 %v1529, %v1538
          %v1554 = vmul.f32 %v1533, %v1538
          %v1555 = vadd.f32 %v1454, %v1539
          %v1556 = vadd.f32 %v1455, %v1540
          %v1557 = vadd.f32 %v1456, %v1541
          %v1558 = vadd.f32 %v1457, %v1542
          %v1559 = vadd.f32 %v1458, %v1543
          %v1560 = vadd.f32 %v1459, %v1544
          %v1561 = vadd.f32 %v1460, %v1545
          %v1562 = vadd.f32 %v1461, %v1546
          %v1563 = vadd.f32 %v1462, %v1547
          %v1564 = vadd.f32 %v1463, %v1548
          %v1565 = vadd.f32 %v1464, %v1549
          %v1566 = vadd.f32 %v1465, %v1550
          %v1567 = vadd.f32 %v1466, %v1551
          %v1568 = vadd.f32 %v1467, %v1552
          %v1569 = vadd.f32 %v1468, %v1553
          %v1570 = vadd.f32 %v1469, %v1554
          %v1571 = vld [vmem:[#allocation2] sm:$0xff]
          %v1572 = vld [vmem:[#allocation2 + $0x8] sm:$0xff]
          %v1573 = vld [vmem:[#allocation2 + $0x10] sm:$0xff]
          %v1574 = vld [vmem:[#allocation2 + $0x18] sm:$0xff]
          %v1575 = vld [vmem:[#allocation2 + $0x20] sm:$0xff]
          %v1576 = vld [vmem:[#allocation2 + $0x28] sm:$0xff]
          %v1577 = vld [vmem:[#allocation2 + $0x30] sm:$0xff]
          %v1578 = vld [vmem:[#allocation2 + $0x38] sm:$0xff]
          %v1579 = vld [vmem:[#allocation2 + $0x40] sm:$0xff]
          %v1580 = vld [vmem:[#allocation2 + $0x48] sm:$0xff]
          %v1581 = vld [vmem:[#allocation2 + $0x50] sm:$0xff]
          %v1582 = vld [vmem:[#allocation2 + $0x58] sm:$0xff]
          %v1583 = vld [vmem:[#allocation2 + $0x60] sm:$0xff]
          %v1584 = vld [vmem:[#allocation2 + $0x68] sm:$0xff]
          %v1585 = vld [vmem:[#allocation2 + $0x70] sm:$0xff]
          %v1586 = vld [vmem:[#allocation2 + $0x78] sm:$0xff]
          %v1587 = vpack.c.bf16 %v1556, %v1555
          %v1588 = vpack.c.bf16 %v1558, %v1557
          %v1589 = vpack.c.bf16 %v1560, %v1559
          %v1590 = vpack.c.bf16 %v1562, %v1561
          %v1591 = vpack.c.bf16 %v1564, %v1563
          %v1592 = vpack.c.bf16 %v1566, %v1565
          %v1593 = vpack.c.bf16 %v1568, %v1567
          %v1594 = vpack.c.bf16 %v1570, %v1569
          %1595 = vmatprep.subr.bf16.mxu0 0
          %1596 = vmatpush1.bf16.msra.mxu0 %v1587
          %1597 = vmatprep.subr.bf16.mxu0 0
          %1598 = vmatpush1.bf16.msra.mxu0 %v1588
          %1599 = vmatprep.subr.bf16.mxu0 0
          %1600 = vmatpush1.bf16.msra.mxu0 %v1589
          %1601 = vmatprep.subr.bf16.mxu0 0
          %1602 = vmatpush1.bf16.msra.mxu0 %v1590
          %1603 = vmatprep.subr.bf16.mxu0 0
          %1604 = vmatpush1.bf16.msra.mxu0 %v1591
          %1605 = vmatprep.subr.bf16.mxu0 0
          %1606 = vmatpush1.bf16.msra.mxu0 %v1592
          %1607 = vmatprep.subr.bf16.mxu0 0
          %1608 = vmatpush1.bf16.msra.mxu0 %v1593
          %1609 = vmatprep.subr.bf16.mxu0 0
          %1610 = vmatpush1.bf16.msra.mxu0 %v1594
          %1611 = vmatprep.subr.bf16.mxu0 0
          %1612 = vmatpush1.bf16.msra.mxu0 0
          %1613 = vmatprep.subr.bf16.mxu0 0
          %1614 = vmatpush1.bf16.msra.mxu0 0
          %1615 = vmatprep.subr.bf16.mxu0 0
          %1616 = vmatpush1.bf16.msra.mxu0 0
          %1617 = vmatprep.subr.bf16.mxu0 0
          %1618 = vmatpush1.bf16.msra.mxu0 0
          %1619 = vmatprep.subr.bf16.mxu0 0
          %1620 = vmatpush1.bf16.msra.mxu0 0
          %1621 = vmatprep.subr.bf16.mxu0 0
          %1622 = vmatpush1.bf16.msra.mxu0 0
          %1623 = vmatprep.subr.bf16.mxu0 0
          %1624 = vmatpush1.bf16.msra.mxu0 0
          %1625 = vmatprep.subr.bf16.mxu0 0
          %1626 = vmatpush1.bf16.msra.mxu0 0
          %1627 = vmatprep.mubr.bf16.mxu0 0
          %1628 = vmatmul.mubr.bf16.gmra.mrb[0].mxu0 %v529
          %v1629 = vpop.f32.mrb[0].mxu0
          %v1630 = vadd.f32 0.0, %v1629
          %v1631 = vpop.f32.mrb[0].mxu0
          %v1632 = vpop.f32.mrb[0].mxu0
          %v1633 = vadd.f32 0.0, %v1632
          %v1634 = vpop.f32.mrb[0].mxu0
          %1635 = vmatprep.mubr.bf16.mxu0 0
          %1636 = vmatmul.mubr.bf16.gmra.mrb[0].mxu0 %v530
          %v1637 = vpop.f32.mrb[0].mxu0
          %v1638 = vadd.f32 0.0, %v1637
          %v1639 = vpop.f32.mrb[0].mxu0
          %v1640 = vpop.f32.mrb[0].mxu0
          %v1641 = vadd.f32 0.0, %v1640
          %v1642 = vpop.f32.mrb[0].mxu0
          %1643 = vmatprep.mubr.bf16.mxu0 0
          %1644 = vmatmul.mubr.bf16.gmra.mrb[0].mxu0 %v531
          %v1645 = vpop.f32.mrb[0].mxu0
          %v1646 = vadd.f32 0.0, %v1645
          %v1647 = vpop.f32.mrb[0].mxu0
          %v1648 = vpop.f32.mrb[0].mxu0
          %v1649 = vadd.f32 0.0, %v1648
          %v1650 = vpop.f32.mrb[0].mxu0
          %1651 = vmatprep.mubr.bf16.mxu0 0
          %1652 = vmatmul.mubr.bf16.gmra.mrb[0].mxu0 %v532
          %v1653 = vpop.f32.mrb[0].mxu0
          %v1654 = vadd.f32 0.0, %v1653
          %v1655 = vpop.f32.mrb[0].mxu0
          %v1656 = vpop.f32.mrb[0].mxu0
          %v1657 = vadd.f32 0.0, %v1656
          %v1658 = vpop.f32.mrb[0].mxu0
          %1659 = vmatprep.mubr.bf16.mxu0 0
          %1660 = vmatmul.mubr.bf16.gmra.mrb[0].mxu0 %v533
          %v1661 = vpop.f32.mrb[0].mxu0
          %v1662 = vadd.f32 0.0, %v1661
          %v1663 = vpop.f32.mrb[0].mxu0
          %v1664 = vpop.f32.mrb[0].mxu0
          %v1665 = vadd.f32 0.0, %v1664
          %v1666 = vpop.f32.mrb[0].mxu0
          %1667 = vmatprep.mubr.bf16.mxu0 0
          %1668 = vmatmul.mubr.bf16.gmra.mrb[0].mxu0 %v534
          %v1669 = vpop.f32.mrb[0].mxu0
          %v1670 = vadd.f32 0.0, %v1669
          %v1671 = vpop.f32.mrb[0].mxu0
          %v1672 = vpop.f32.mrb[0].mxu0
          %v1673 = vadd.f32 0.0, %v1672
          %v1674 = vpop.f32.mrb[0].mxu0
          %1675 = vmatprep.mubr.bf16.mxu0 0
          %1676 = vmatmul.mubr.bf16.gmra.mrb[0].mxu0 %v535
          %v1677 = vpop.f32.mrb[0].mxu0
          %v1678 = vadd.f32 0.0, %v1677
          %v1679 = vpop.f32.mrb[0].mxu0
          %v1680 = vpop.f32.mrb[0].mxu0
          %v1681 = vadd.f32 0.0, %v1680
          %v1682 = vpop.f32.mrb[0].mxu0
          %1683 = vmatprep.mubr.bf16.mxu0 0
          %1684 = vmatmul.mubr.bf16.gmra.mrb[0].mxu0 %v536
          %v1685 = vpop.f32.mrb[0].mxu0
          %v1686 = vadd.f32 0.0, %v1685
          %v1687 = vpop.f32.mrb[0].mxu0
          %v1688 = vpop.f32.mrb[0].mxu0
          %v1689 = vadd.f32 0.0, %v1688
          %v1690 = vpop.f32.mrb[0].mxu0
          %1691 = vdwg.mxu0
          %v1692 = vadd.f32 %v1571, %v1630
          %v1693 = vadd.f32 %v1572, %v1633
          %v1694 = vadd.f32 %v1573, %v1638
          %v1695 = vadd.f32 %v1574, %v1641
          %v1696 = vadd.f32 %v1575, %v1646
          %v1697 = vadd.f32 %v1576, %v1649
          %v1698 = vadd.f32 %v1577, %v1654
          %v1699 = vadd.f32 %v1578, %v1657
          %v1700 = vadd.f32 %v1579, %v1662
          %v1701 = vadd.f32 %v1580, %v1665
          %v1702 = vadd.f32 %v1581, %v1670
          %v1703 = vadd.f32 %v1582, %v1673
          %v1704 = vadd.f32 %v1583, %v1678
          %v1705 = vadd.f32 %v1584, %v1681
          %v1706 = vadd.f32 %v1585, %v1686
          %v1707 = vadd.f32 %v1586, %v1689
          %1708 = vst [vmem:[#allocation2] sm:$0xff] %v1692
          %1709 = vst [vmem:[#allocation2 + $0x8] sm:$0xff] %v1693
          %1710 = vst [vmem:[#allocation2 + $0x10] sm:$0xff] %v1694
          %1711 = vst [vmem:[#allocation2 + $0x18] sm:$0xff] %v1695
          %1712 = vst [vmem:[#allocation2 + $0x20] sm:$0xff] %v1696
          %1713 = vst [vmem:[#allocation2 + $0x28] sm:$0xff] %v1697
          %1714 = vst [vmem:[#allocation2 + $0x30] sm:$0xff] %v1698
          %1715 = vst [vmem:[#allocation2 + $0x38] sm:$0xff] %v1699
          %1716 = vst [vmem:[#allocation2 + $0x40] sm:$0xff] %v1700
          %1717 = vst [vmem:[#allocation2 + $0x48] sm:$0xff] %v1701
          %1718 = vst [vmem:[#allocation2 + $0x50] sm:$0xff] %v1702
          %1719 = vst [vmem:[#allocation2 + $0x58] sm:$0xff] %v1703
          %1720 = vst [vmem:[#allocation2 + $0x60] sm:$0xff] %v1704
          %1721 = vst [vmem:[#allocation2 + $0x68] sm:$0xff] %v1705
          %1722 = vst [vmem:[#allocation2 + $0x70] sm:$0xff] %v1706
          %1723 = vst [vmem:[#allocation2 + $0x78] sm:$0xff] %v1707
        $region76: #{tpu_custom_call.1} parent=67 // pred_fallthru
          _
        %p1724 = scmp.ge.s32.totalorder %s24, 1
        // Predicated region
        $region77: #{tpu_custom_call.1} parent=67 // pred_check
          %p1725 = pneg %p1724
        $region78: #{tpu_custom_call.1} parent=67 // pred_check_branch
          %1727 = sbr.rel (%p1725) target = $region80
        $region79: #{tpu_custom_call.1} parent=67 // pred_region
          %v1728 = vld [vmem:[%s427] sm:$0xff]
          %v1729 = vld [vmem:[%s427 + $0x8] sm:$0xff]
          %v1730 = vld [vmem:[%s427 + $0x10] sm:$0xff]
          %v1731 = vld [vmem:[%s427 + $0x18] sm:$0xff]
          %v1732 = vld [vmem:[%s427 + $0x20] sm:$0xff]
          %v1733 = vld [vmem:[%s427 + $0x28] sm:$0xff]
          %v1734 = vld [vmem:[%s427 + $0x30] sm:$0xff]
          %v1735 = vld [vmem:[%s427 + $0x38] sm:$0xff]
          %v1736 = vld [vmem:[%s427 + $0x40] sm:$0xff]
          %v1737 = vld [vmem:[%s427 + $0x48] sm:$0xff]
          %v1738 = vld [vmem:[%s427 + $0x50] sm:$0xff]
          %v1739 = vld [vmem:[%s427 + $0x58] sm:$0xff]
          %v1740 = vld [vmem:[%s427 + $0x60] sm:$0xff]
          %v1741 = vld [vmem:[%s427 + $0x68] sm:$0xff]
          %v1742 = vld [vmem:[%s427 + $0x70] sm:$0xff]
          %v1743 = vld [vmem:[%s427 + $0x78] sm:$0xff]
          %v1744 = vld [vmem:[%s8] sm:$0x1]
          %1746 = vset.pattern.permute.xlu0 0
          %1747 = vperm.xlu0 %1746, %v1728
          %v1748 = vpop.permute.xlu0 %1747
          %1751 = vset.pattern.permute.xlu0 0
          %1752 = vperm.xlu0 %1751, %v1729
          %v1753 = vpop.permute.xlu0 %1752
          %1756 = vset.pattern.permute.xlu0 0
          %1757 = vperm.xlu0 %1756, %v1730
          %v1758 = vpop.permute.xlu0 %1757
          %1761 = vset.pattern.permute.xlu0 0
          %1762 = vperm.xlu0 %1761, %v1731
          %v1763 = vpop.permute.xlu0 %1762
          %1766 = vset.pattern.permute.xlu0 0
          %1767 = vperm.xlu0 %1766, %v1732
          %v1768 = vpop.permute.xlu0 %1767
          %1771 = vset.pattern.permute.xlu0 0
          %1772 = vperm.xlu0 %1771, %v1733
          %v1773 = vpop.permute.xlu0 %1772
          %1776 = vset.pattern.permute.xlu0 0
          %1777 = vperm.xlu0 %1776, %v1734
          %v1778 = vpop.permute.xlu0 %1777
          %1781 = vset.pattern.permute.xlu0 0
          %1782 = vperm.xlu0 %1781, %v1735
          %v1783 = vpop.permute.xlu0 %1782
          %1786 = vset.pattern.permute.xlu0 0
          %1787 = vperm.xlu0 %1786, %v1736
          %v1788 = vpop.permute.xlu0 %1787
          %1791 = vset.pattern.permute.xlu0 0
          %1792 = vperm.xlu0 %1791, %v1737
          %v1793 = vpop.permute.xlu0 %1792
          %1796 = vset.pattern.permute.xlu0 0
          %1797 = vperm.xlu0 %1796, %v1738
          %v1798 = vpop.permute.xlu0 %1797
          %1801 = vset.pattern.permute.xlu0 0
          %1802 = vperm.xlu0 %1801, %v1739
          %v1803 = vpop.permute.xlu0 %1802
          %1806 = vset.pattern.permute.xlu0 0
          %1807 = vperm.xlu0 %1806, %v1740
          %v1808 = vpop.permute.xlu0 %1807
          %1811 = vset.pattern.permute.xlu0 0
          %1812 = vperm.xlu0 %1811, %v1741
          %v1813 = vpop.permute.xlu0 %1812
          %1816 = vset.pattern.permute.xlu0 0
          %1817 = vperm.xlu0 %1816, %v1742
          %v1818 = vpop.permute.xlu0 %1817
          %1821 = vset.pattern.permute.xlu0 0
          %1822 = vperm.xlu0 %1821, %v1743
          %v1823 = vpop.permute.xlu0 %1822
          %v1826 = vlaneseq
          %v1827 = vshrl.u32 %v1826, 7
          %v1828 = vsub.s32 0, %v1827
          %v1829 = vrot.slane %v1744, %v1828
          %v1831 = vmul.f32 %v1748, %v1829
          %v1832 = vmul.f32 %v1753, %v1829
          %v1833 = vmul.f32 %v1758, %v1829
          %v1834 = vmul.f32 %v1763, %v1829
          %v1835 = vmul.f32 %v1768, %v1829
          %v1836 = vmul.f32 %v1773, %v1829
          %v1837 = vmul.f32 %v1778, %v1829
          %v1838 = vmul.f32 %v1783, %v1829
          %v1839 = vmul.f32 %v1788, %v1829
          %v1840 = vmul.f32 %v1793, %v1829
          %v1841 = vmul.f32 %v1798, %v1829
          %v1842 = vmul.f32 %v1803, %v1829
          %v1843 = vmul.f32 %v1808, %v1829
          %v1844 = vmul.f32 %v1813, %v1829
          %v1845 = vmul.f32 %v1818, %v1829
          %v1846 = vmul.f32 %v1823, %v1829
          %v1847 = vld [vmem:[%s9] sm:$0x1]
          %v1849 = vlaneseq
          %v1850 = vshrl.u32 %v1849, 7
          %v1851 = vsub.s32 0, %v1850
          %v1852 = vrot.slane %v1847, %v1851
          %v1854 = vadd.f32 %v1831, %v1852
          %v1855 = vadd.f32 %v1832, %v1852
          %v1856 = vadd.f32 %v1833, %v1852
          %v1857 = vadd.f32 %v1834, %v1852
          %v1858 = vadd.f32 %v1835, %v1852
          %v1859 = vadd.f32 %v1836, %v1852
          %v1860 = vadd.f32 %v1837, %v1852
          %v1861 = vadd.f32 %v1838, %v1852
          %v1862 = vadd.f32 %v1839, %v1852
          %v1863 = vadd.f32 %v1840, %v1852
          %v1864 = vadd.f32 %v1841, %v1852
          %v1865 = vadd.f32 %v1842, %v1852
          %v1866 = vadd.f32 %v1843, %v1852
          %v1867 = vadd.f32 %v1844, %v1852
          %v1868 = vadd.f32 %v1845, %v1852
          %v1869 = vadd.f32 %v1846, %v1852
          %v1870 = vmax.f32 %v1854, 0.0
          %v1871 = vmax.f32 %v1855, 0.0
          %v1872 = vmax.f32 %v1856, 0.0
          %v1873 = vmax.f32 %v1857, 0.0
          %v1874 = vmax.f32 %v1858, 0.0
          %v1875 = vmax.f32 %v1859, 0.0
          %v1876 = vmax.f32 %v1860, 0.0
          %v1877 = vmax.f32 %v1861, 0.0
          %v1878 = vmax.f32 %v1862, 0.0
          %v1879 = vmax.f32 %v1863, 0.0
          %v1880 = vmax.f32 %v1864, 0.0
          %v1881 = vmax.f32 %v1865, 0.0
          %v1882 = vmax.f32 %v1866, 0.0
          %v1883 = vmax.f32 %v1867, 0.0
          %v1884 = vmax.f32 %v1868, 0.0
          %v1885 = vmax.f32 %v1869, 0.0
          %v1886 = vpack.c.bf16 %v1871, %v1870
          %v1887 = vpack.c.bf16 %v1873, %v1872
          %v1888 = vpack.c.bf16 %v1875, %v1874
          %v1889 = vpack.c.bf16 %v1877, %v1876
          %v1890 = vpack.c.bf16 %v1879, %v1878
          %v1891 = vpack.c.bf16 %v1881, %v1880
          %v1892 = vpack.c.bf16 %v1883, %v1882
          %v1893 = vpack.c.bf16 %v1885, %v1884
          %v1894 = vld [vmem:[%s10] sm:$0xf]
          %v1895 = vld [vmem:[%s10 + $0x4] sm:$0xf]
          %v1896 = vld [vmem:[%s10 + $0x8] sm:$0xf]
          %v1897 = vld [vmem:[%s10 + $0xc] sm:$0xf]
          %v1898 = vld [vmem:[%s10 + $0x10] sm:$0xf]
          %v1899 = vld [vmem:[%s10 + $0x14] sm:$0xf]
          %v1900 = vld [vmem:[%s10 + $0x18] sm:$0xf]
          %v1901 = vld [vmem:[%s10 + $0x1c] sm:$0xf]
          %v1902 = vld [vmem:[%s10 + $0x20] sm:$0xf]
          %v1903 = vld [vmem:[%s10 + $0x24] sm:$0xf]
          %v1904 = vld [vmem:[%s10 + $0x28] sm:$0xf]
          %v1905 = vld [vmem:[%s10 + $0x2c] sm:$0xf]
          %v1906 = vld [vmem:[%s10 + $0x30] sm:$0xf]
          %v1907 = vld [vmem:[%s10 + $0x34] sm:$0xf]
          %v1908 = vld [vmem:[%s10 + $0x38] sm:$0xf]
          %v1909 = vld [vmem:[%s10 + $0x3c] sm:$0xf]
          %v1910 = vld [vmem:[%s11] sm:$0x1]
          %v1912 = vlaneseq
          %v1913 = vshrl.u32 %v1912, 7
          %v1914 = vsub.s32 0, %v1913
          %v1915 = vrot.slane %v1910, %v1914
          %v1933 = vunpack.c.l.b16 %v1894
          %v1934 = vunpack.c.l.b16 %v1895
          %v1935 = vunpack.c.l.b16 %v1896
          %v1936 = vunpack.c.l.b16 %v1897
          %v1937 = vunpack.c.l.b16 %v1898
          %v1938 = vunpack.c.l.b16 %v1899
          %v1939 = vunpack.c.l.b16 %v1900
          %v1940 = vunpack.c.l.b16 %v1901
          %v1941 = vunpack.c.l.b16 %v1902
          %v1942 = vunpack.c.l.b16 %v1903
          %v1943 = vunpack.c.l.b16 %v1904
          %v1944 = vunpack.c.l.b16 %v1905
          %v1945 = vunpack.c.l.b16 %v1906
          %v1946 = vunpack.c.l.b16 %v1907
          %v1947 = vunpack.c.l.b16 %v1908
          %v1948 = vunpack.c.l.b16 %v1909
          %v1949 = vpack.c.b16 %v1934, %v1933
          %v1950 = vpack.c.b16 %v1936, %v1935
          %v1951 = vpack.c.b16 %v1938, %v1937
          %v1952 = vpack.c.b16 %v1940, %v1939
          %v1953 = vpack.c.b16 %v1942, %v1941
          %v1954 = vpack.c.b16 %v1944, %v1943
          %v1955 = vpack.c.b16 %v1946, %v1945
          %v1956 = vpack.c.b16 %v1948, %v1947
          %1965 = vmatprep.subr.bf16.mxu0 0
          %1966 = vmatpush1.bf16.msra.mxu0 %v1949
          %1967 = vmatprep.subr.bf16.mxu0 0
          %1968 = vmatpush1.bf16.msra.mxu0 %v1950
          %1969 = vmatprep.subr.bf16.mxu0 0
          %1970 = vmatpush1.bf16.msra.mxu0 %v1951
          %1971 = vmatprep.subr.bf16.mxu0 0
          %1972 = vmatpush1.bf16.msra.mxu0 %v1952
          %1973 = vmatprep.subr.bf16.mxu0 0
          %1974 = vmatpush1.bf16.msra.mxu0 %v1953
          %1975 = vmatprep.subr.bf16.mxu0 0
          %1976 = vmatpush1.bf16.msra.mxu0 %v1954
          %1977 = vmatprep.subr.bf16.mxu0 0
          %1978 = vmatpush1.bf16.msra.mxu0 %v1955
          %1979 = vmatprep.subr.bf16.mxu0 0
          %1980 = vmatpush1.bf16.msra.mxu0 %v1956
          %1981 = vmatprep.subr.bf16.mxu0 0
          %1982 = vmatpush1.bf16.msra.mxu0 0
          %1983 = vmatprep.subr.bf16.mxu0 0
          %1984 = vmatpush1.bf16.msra.mxu0 0
          %1985 = vmatprep.subr.bf16.mxu0 0
          %1986 = vmatpush1.bf16.msra.mxu0 0
          %1987 = vmatprep.subr.bf16.mxu0 0
          %1988 = vmatpush1.bf16.msra.mxu0 0
          %1989 = vmatprep.subr.bf16.mxu0 0
          %1990 = vmatpush1.bf16.msra.mxu0 0
          %1991 = vmatprep.subr.bf16.mxu0 0
          %1992 = vmatpush1.bf16.msra.mxu0 0
          %1993 = vmatprep.subr.bf16.mxu0 0
          %1994 = vmatpush1.bf16.msra.mxu0 0
          %1995 = vmatprep.subr.bf16.mxu0 0
          %1996 = vmatpush1.bf16.msra.mxu0 0
          %1997 = vmatprep.mubr.bf16.mxu0 0
          %1998 = vmatmul.mubr.bf16.gmra.mrb[0].mxu0 %v1886
          %v1999 = vpop.f32.mrb[0].mxu0
          %v2000 = vadd.f32 %v1915, %v1999
          %v2001 = vpop.f32.mrb[0].mxu0
          %v2002 = vpop.f32.mrb[0].mxu0
          %v2003 = vadd.f32 %v1915, %v2002
          %v2004 = vpop.f32.mrb[0].mxu0
          %2005 = vmatprep.mubr.bf16.mxu0 0
          %2006 = vmatmul.mubr.bf16.gmra.mrb[0].mxu0 %v1887
          %v2007 = vpop.f32.mrb[0].mxu0
          %v2008 = vadd.f32 %v1915, %v2007
          %v2009 = vpop.f32.mrb[0].mxu0
          %v2010 = vpop.f32.mrb[0].mxu0
          %v2011 = vadd.f32 %v1915, %v2010
          %v2012 = vpop.f32.mrb[0].mxu0
          %2013 = vmatprep.mubr.bf16.mxu0 0
          %2014 = vmatmul.mubr.bf16.gmra.mrb[0].mxu0 %v1888
          %v2015 = vpop.f32.mrb[0].mxu0
          %v2016 = vadd.f32 %v1915, %v2015
          %v2017 = vpop.f32.mrb[0].mxu0
          %v2018 = vpop.f32.mrb[0].mxu0
          %v2019 = vadd.f32 %v1915, %v2018
          %v2020 = vpop.f32.mrb[0].mxu0
          %2021 = vmatprep.mubr.bf16.mxu0 0
          %2022 = vmatmul.mubr.bf16.gmra.mrb[0].mxu0 %v1889
          %v2023 = vpop.f32.mrb[0].mxu0
          %v2024 = vadd.f32 %v1915, %v2023
          %v2025 = vpop.f32.mrb[0].mxu0
          %v2026 = vpop.f32.mrb[0].mxu0
          %v2027 = vadd.f32 %v1915, %v2026
          %v2028 = vpop.f32.mrb[0].mxu0
          %2029 = vmatprep.mubr.bf16.mxu0 0
          %2030 = vmatmul.mubr.bf16.gmra.mrb[0].mxu0 %v1890
          %v2031 = vpop.f32.mrb[0].mxu0
          %v2032 = vadd.f32 %v1915, %v2031
          %v2033 = vpop.f32.mrb[0].mxu0
          %v2034 = vpop.f32.mrb[0].mxu0
          %v2035 = vadd.f32 %v1915, %v2034
          %v2036 = vpop.f32.mrb[0].mxu0
          %2037 = vmatprep.mubr.bf16.mxu0 0
          %2038 = vmatmul.mubr.bf16.gmra.mrb[0].mxu0 %v1891
          %v2039 = vpop.f32.mrb[0].mxu0
          %v2040 = vadd.f32 %v1915, %v2039
          %v2041 = vpop.f32.mrb[0].mxu0
          %v2042 = vpop.f32.mrb[0].mxu0
          %v2043 = vadd.f32 %v1915, %v2042
          %v2044 = vpop.f32.mrb[0].mxu0
          %2045 = vmatprep.mubr.bf16.mxu0 0
          %2046 = vmatmul.mubr.bf16.gmra.mrb[0].mxu0 %v1892
          %v2047 = vpop.f32.mrb[0].mxu0
          %v2048 = vadd.f32 %v1915, %v2047
          %v2049 = vpop.f32.mrb[0].mxu0
          %v2050 = vpop.f32.mrb[0].mxu0
          %v2051 = vadd.f32 %v1915, %v2050
          %v2052 = vpop.f32.mrb[0].mxu0
          %2053 = vmatprep.mubr.bf16.mxu0 0
          %2054 = vmatmul.mubr.bf16.gmra.mrb[0].mxu0 %v1893
          %v2055 = vpop.f32.mrb[0].mxu0
          %v2056 = vadd.f32 %v1915, %v2055
          %v2057 = vpop.f32.mrb[0].mxu0
          %v2058 = vpop.f32.mrb[0].mxu0
          %v2059 = vadd.f32 %v1915, %v2058
          %v2060 = vpop.f32.mrb[0].mxu0
          %2061 = vdwg.mxu0
          %v2062 = vld [vmem:[#allocation2] sm:$0xff]
          %v2063 = vld [vmem:[#allocation2 + $0x8] sm:$0xff]
          %v2064 = vld [vmem:[#allocation2 + $0x10] sm:$0xff]
          %v2065 = vld [vmem:[#allocation2 + $0x18] sm:$0xff]
          %v2066 = vld [vmem:[#allocation2 + $0x20] sm:$0xff]
          %v2067 = vld [vmem:[#allocation2 + $0x28] sm:$0xff]
          %v2068 = vld [vmem:[#allocation2 + $0x30] sm:$0xff]
          %v2069 = vld [vmem:[#allocation2 + $0x38] sm:$0xff]
          %v2070 = vld [vmem:[#allocation2 + $0x40] sm:$0xff]
          %v2071 = vld [vmem:[#allocation2 + $0x48] sm:$0xff]
          %v2072 = vld [vmem:[#allocation2 + $0x50] sm:$0xff]
          %v2073 = vld [vmem:[#allocation2 + $0x58] sm:$0xff]
          %v2074 = vld [vmem:[#allocation2 + $0x60] sm:$0xff]
          %v2075 = vld [vmem:[#allocation2 + $0x68] sm:$0xff]
          %v2076 = vld [vmem:[#allocation2 + $0x70] sm:$0xff]
          %v2077 = vld [vmem:[#allocation2 + $0x78] sm:$0xff]
          %v2078 = vpack.c.bf16 %v2003, %v2000
          %v2079 = vpack.c.bf16 %v2011, %v2008
          %v2080 = vpack.c.bf16 %v2019, %v2016
          %v2081 = vpack.c.bf16 %v2027, %v2024
          %v2082 = vpack.c.bf16 %v2035, %v2032
          %v2083 = vpack.c.bf16 %v2043, %v2040
          %v2084 = vpack.c.bf16 %v2051, %v2048
          %v2085 = vpack.c.bf16 %v2059, %v2056
          %2086 = vmatprep.subr.bf16.mxu0 0
          %2087 = vmatpush1.bf16.msra.mxu0 %v2078
          %2088 = vmatprep.subr.bf16.mxu0 0
          %2089 = vmatpush1.bf16.msra.mxu0 %v2079
          %2090 = vmatprep.subr.bf16.mxu0 0
          %2091 = vmatpush1.bf16.msra.mxu0 %v2080
          %2092 = vmatprep.subr.bf16.mxu0 0
          %2093 = vmatpush1.bf16.msra.mxu0 %v2081
          %2094 = vmatprep.subr.bf16.mxu0 0
          %2095 = vmatpush1.bf16.msra.mxu0 %v2082
          %2096 = vmatprep.subr.bf16.mxu0 0
          %2097 = vmatpush1.bf16.msra.mxu0 %v2083
          %2098 = vmatprep.subr.bf16.mxu0 0
          %2099 = vmatpush1.bf16.msra.mxu0 %v2084
          %2100 = vmatprep.subr.bf16.mxu0 0
          %2101 = vmatpush1.bf16.msra.mxu0 %v2085
          %2102 = vmatprep.subr.bf16.mxu0 0
          %2103 = vmatpush1.bf16.msra.mxu0 0
          %2104 = vmatprep.subr.bf16.mxu0 0
          %2105 = vmatpush1.bf16.msra.mxu0 0
          %2106 = vmatprep.subr.bf16.mxu0 0
          %2107 = vmatpush1.bf16.msra.mxu0 0
          %2108 = vmatprep.subr.bf16.mxu0 0
          %2109 = vmatpush1.bf16.msra.mxu0 0
          %2110 = vmatprep.subr.bf16.mxu0 0
          %2111 = vmatpush1.bf16.msra.mxu0 0
          %2112 = vmatprep.subr.bf16.mxu0 0
          %2113 = vmatpush1.bf16.msra.mxu0 0
          %2114 = vmatprep.subr.bf16.mxu0 0
          %2115 = vmatpush1.bf16.msra.mxu0 0
          %2116 = vmatprep.subr.bf16.mxu0 0
          %2117 = vmatpush1.bf16.msra.mxu0 0
          %2118 = vmatprep.mubr.bf16.mxu0 0
          %2119 = vmatmul.mubr.bf16.gmra.mrb[0].mxu0 %v529
          %v2120 = vpop.f32.mrb[0].mxu0
          %v2121 = vadd.f32 0.0, %v2120
          %v2122 = vpop.f32.mrb[0].mxu0
          %v2123 = vpop.f32.mrb[0].mxu0
          %v2124 = vadd.f32 0.0, %v2123
          %v2125 = vpop.f32.mrb[0].mxu0
          %2126 = vmatprep.mubr.bf16.mxu0 0
          %2127 = vmatmul.mubr.bf16.gmra.mrb[0].mxu0 %v530
          %v2128 = vpop.f32.mrb[0].mxu0
          %v2129 = vadd.f32 0.0, %v2128
          %v2130 = vpop.f32.mrb[0].mxu0
          %v2131 = vpop.f32.mrb[0].mxu0
          %v2132 = vadd.f32 0.0, %v2131
          %v2133 = vpop.f32.mrb[0].mxu0
          %2134 = vmatprep.mubr.bf16.mxu0 0
          %2135 = vmatmul.mubr.bf16.gmra.mrb[0].mxu0 %v531
          %v2136 = vpop.f32.mrb[0].mxu0
          %v2137 = vadd.f32 0.0, %v2136
          %v2138 = vpop.f32.mrb[0].mxu0
          %v2139 = vpop.f32.mrb[0].mxu0
          %v2140 = vadd.f32 0.0, %v2139
          %v2141 = vpop.f32.mrb[0].mxu0
          %2142 = vmatprep.mubr.bf16.mxu0 0
          %2143 = vmatmul.mubr.bf16.gmra.mrb[0].mxu0 %v532
          %v2144 = vpop.f32.mrb[0].mxu0
          %v2145 = vadd.f32 0.0, %v2144
          %v2146 = vpop.f32.mrb[0].mxu0
          %v2147 = vpop.f32.mrb[0].mxu0
          %v2148 = vadd.f32 0.0, %v2147
          %v2149 = vpop.f32.mrb[0].mxu0
          %2150 = vmatprep.mubr.bf16.mxu0 0
          %2151 = vmatmul.mubr.bf16.gmra.mrb[0].mxu0 %v533
          %v2152 = vpop.f32.mrb[0].mxu0
          %v2153 = vadd.f32 0.0, %v2152
          %v2154 = vpop.f32.mrb[0].mxu0
          %v2155 = vpop.f32.mrb[0].mxu0
          %v2156 = vadd.f32 0.0, %v2155
          %v2157 = vpop.f32.mrb[0].mxu0
          %2158 = vmatprep.mubr.bf16.mxu0 0
          %2159 = vmatmul.mubr.bf16.gmra.mrb[0].mxu0 %v534
          %v2160 = vpop.f32.mrb[0].mxu0
          %v2161 = vadd.f32 0.0, %v2160
          %v2162 = vpop.f32.mrb[0].mxu0
          %v2163 = vpop.f32.mrb[0].mxu0
          %v2164 = vadd.f32 0.0, %v2163
          %v2165 = vpop.f32.mrb[0].mxu0
          %2166 = vmatprep.mubr.bf16.mxu0 0
          %2167 = vmatmul.mubr.bf16.gmra.mrb[0].mxu0 %v535
          %v2168 = vpop.f32.mrb[0].mxu0
          %v2169 = vadd.f32 0.0, %v2168
          %v2170 = vpop.f32.mrb[0].mxu0
          %v2171 = vpop.f32.mrb[0].mxu0
          %v2172 = vadd.f32 0.0, %v2171
          %v2173 = vpop.f32.mrb[0].mxu0
          %2174 = vmatprep.mubr.bf16.mxu0 0
          %2175 = vmatmul.mubr.bf16.gmra.mrb[0].mxu0 %v536
          %v2176 = vpop.f32.mrb[0].mxu0
          %v2177 = vadd.f32 0.0, %v2176
          %v2178 = vpop.f32.mrb[0].mxu0
          %v2179 = vpop.f32.mrb[0].mxu0
          %v2180 = vadd.f32 0.0, %v2179
          %v2181 = vpop.f32.mrb[0].mxu0
          %2182 = vdwg.mxu0
          %v2183 = vadd.f32 %v2062, %v2121
          %v2184 = vadd.f32 %v2063, %v2124
          %v2185 = vadd.f32 %v2064, %v2129
          %v2186 = vadd.f32 %v2065, %v2132
          %v2187 = vadd.f32 %v2066, %v2137
          %v2188 = vadd.f32 %v2067, %v2140
          %v2189 = vadd.f32 %v2068, %v2145
          %v2190 = vadd.f32 %v2069, %v2148
          %v2191 = vadd.f32 %v2070, %v2153
          %v2192 = vadd.f32 %v2071, %v2156
          %v2193 = vadd.f32 %v2072, %v2161
          %v2194 = vadd.f32 %v2073, %v2164
          %v2195 = vadd.f32 %v2074, %v2169
          %v2196 = vadd.f32 %v2075, %v2172
          %v2197 = vadd.f32 %v2076, %v2177
          %v2198 = vadd.f32 %v2077, %v2180
          %2199 = vst [vmem:[#allocation2] sm:$0xff] %v2183
          %2200 = vst [vmem:[#allocation2 + $0x8] sm:$0xff] %v2184
          %2201 = vst [vmem:[#allocation2 + $0x10] sm:$0xff] %v2185
          %2202 = vst [vmem:[#allocation2 + $0x18] sm:$0xff] %v2186
          %2203 = vst [vmem:[#allocation2 + $0x20] sm:$0xff] %v2187
          %2204 = vst [vmem:[#allocation2 + $0x28] sm:$0xff] %v2188
          %2205 = vst [vmem:[#allocation2 + $0x30] sm:$0xff] %v2189
          %2206 = vst [vmem:[#allocation2 + $0x38] sm:$0xff] %v2190
          %2207 = vst [vmem:[#allocation2 + $0x40] sm:$0xff] %v2191
          %2208 = vst [vmem:[#allocation2 + $0x48] sm:$0xff] %v2192
          %2209 = vst [vmem:[#allocation2 + $0x50] sm:$0xff] %v2193
          %2210 = vst [vmem:[#allocation2 + $0x58] sm:$0xff] %v2194
          %2211 = vst [vmem:[#allocation2 + $0x60] sm:$0xff] %v2195
          %2212 = vst [vmem:[#allocation2 + $0x68] sm:$0xff] %v2196
          %2213 = vst [vmem:[#allocation2 + $0x70] sm:$0xff] %v2197
          %2214 = vst [vmem:[#allocation2 + $0x78] sm:$0xff] %v2198
        $region80: #{tpu_custom_call.1} parent=67 // pred_fallthru
          _
        // Predicated region
        $region81: #{tpu_custom_call.1} parent=67 // pred_check
          %p2215 = pneg %p304
        $region82: #{tpu_custom_call.1} parent=67 // pred_check_branch
          %2217 = sbr.rel (%p2215) target = $region84
        $region83: #{tpu_custom_call.1} parent=67 // pred_region
          %s2219 = ssub.s32 2048, 2048
          %2220 = vsyncadd [#allocation3], %s2219
          %s2221 = sshll.u32 [#allocation2], 4
          %s2222 = int_to_ptr.vmem [resolvable:$true] %s2221
          %2227 = dma.vmem_to_hbm [thread:$0]  %s2222, 2048, %s12, [#allocation3], 128, 128, 8
        $region84: #{tpu_custom_call.1} parent=67 // pred_fallthru
          _
        // Predicated region
        $region85: #{tpu_custom_call.1} parent=67 // pred_check
          %p2228 = pneg %p304
        $region86: #{tpu_custom_call.1} parent=67 // pred_check_branch
          %2230 = sbr.rel (%p2228) target = $region88
        $region87: #{tpu_custom_call.1} parent=67 // pred_region
          %2231 = dma.done [#allocation3], 2048
        $region88: #{tpu_custom_call.1} parent=67 // pred_fallthru
          _
      $region68: #{tpu_custom_call.1} parent=5 // pred_fallthru
        _
      %p2232 = scmp.le.s32.totalorder 2, %s19
      // Predicated region
      $region89: #{tpu_custom_call.1} parent=5 // pred_check
        %p2233 = pneg %p2232
      $region90: #{tpu_custom_call.1} parent=5 // pred_check_branch
        %2235 = sbr.rel (%p2233) target = $region92
      $region91: #{tpu_custom_call.1} parent=5 // pred_region
        %s2236 = ssub.s32 %s19, 2
      $region92: #{tpu_custom_call.1} parent=5 // pred_fallthru
        _
    $region6: #{tpu_custom_call.1} parent=1 // loop_footer
      %s23 = sadd.s32 1, %s19
    $region7: #{tpu_custom_call.1} parent=1 // loop_footer_branch
      %18 = sbr.rel target = $region3
    $region8: #{tpu_custom_call.1} parent=1 // loop_exit
      _
    %2237 = vsyncpa [#allocation3], 1
    %s2238 = scalar_lea.sflag [#allocation3], 1
    %2239 = vsyncpa %s2238, 1

</llo_original>
